<compile_context>
chip_gen: v7x
topology: tpu7x:2x2x1
jax: 0.10.0
libtpu: 0.0.40
codegen_flags: <defaults>
</compile_context>

<pallas_src>
import functools

import jax
import jax.numpy as jnp
from jax.experimental import pallas as pl
from jax.experimental.pallas import tpu as pltpu


def attention_kernel(
    dec_hx_ref,     # (TB, n)          f32
    enc_out_ref,    # (TB, t, n)       stream dtype (bf16 by default)
    enc_feat_ref,   # (TB, t, n)       stream dtype (bf16 by default)
    cov_ref,        # (TB, t)          f32
    mask_ref,       # (TB, t)          f32
    ws_w_ref,       # (n, n)
    ws_b_ref,       # (1, n)
    wc_w_ref,       # (1, n)
    wc_b_ref,       # (1, n)
    v_w_ref,        # (1, n)
    v_b_ref,        # (1, 1)
    lin_w_ref,      # (2n, n)
    lin_b_ref,      # (1, n)
    final_ref,      # out: (TB, n)
    align_ref,      # out: (TB, t)
    next_cov_ref,   # out: (TB, t)  (aliased with the coverage input)
    *,
    compute_dtype,
):
    n = dec_hx_ref.shape[1]

    dec_hx = dec_hx_ref[...].astype(jnp.float32)           # (TB, n)
    cov = cov_ref[...]                                      # (TB, t)
    mask = mask_ref[...]                                    # (TB, t)

    # dec_feature = W_s(decoder_hx) on the MXU; ws_b AND wc_b are folded in once per
    # row so the bias adds never touch the big (TB, t, n) tensor.
    dec_feature = (
        jnp.dot(dec_hx, ws_w_ref[...], preferred_element_type=jnp.float32)
        + ws_b_ref[...]
        + wc_b_ref[...]
    )                                                       # (TB, n)

    # att_features + coverage feature (Linear(1, n) folded in as an outer product),
    # then tanh.  compute_dtype is f32 by default; bf16 allowed on v6e/v7x.
    att = (
        enc_feat_ref[...].astype(compute_dtype)
        + dec_feature.astype(compute_dtype)[:, None, :]
        + cov.astype(compute_dtype)[:, :, None]
        * wc_w_ref[...].astype(compute_dtype)[None, :, :]
    )                                                       # (TB, t, n)
    e = jnp.tanh(att)                                       # (TB, t, n)

    # scores = v(e): contract the hidden (lane) axis, accumulate in f32, add bias.
    scores = (
        jnp.sum(e.astype(jnp.float32) * v_w_ref[...][None, :, :], axis=-1)
        + v_b_ref[...]
    )                                                       # (TB, t)

    # Softmax over the sequence (lane) axis with an exact reciprocal, then mask.
    # (Matches the PyTorch module: mask applied *after* softmax, no renormalization.)
    m = jnp.max(scores, axis=-1, keepdims=True)
    ex = jnp.exp(scores - m)
    denom = jnp.sum(ex, axis=-1, keepdims=True)
    align = (ex / denom) * mask                             # (TB, t)

    align_ref[...] = align
    next_cov_ref[...] = cov + align

    # content_vector on the MXU: (TB, 1, t) x (TB, t, n) -> (TB, 1, n), f32 accumulate.
    enc_out = enc_out_ref[...]
    content = jnp.einsum(
        'bqt,btn->bqn',
        align[:, None, :].astype(enc_out.dtype),
        enc_out,
        preferred_element_type=jnp.float32,
    )[:, 0, :]                                              # (TB, n)

    # final_dist = tanh(linear(cat(content, decoder_hx))) as a split matmul.
    lin_top = lin_w_ref[0:n, :]                             # acts on content
    lin_bot = lin_w_ref[n:2 * n, :]                         # acts on decoder_hx
    final = jnp.tanh(
        jnp.dot(content, lin_top, preferred_element_type=jnp.float32)
        + jnp.dot(dec_hx, lin_bot, preferred_element_type=jnp.float32)
        + lin_b_ref[...]
    )                                                       # (TB, n)
    final_ref[...] = final.astype(final_ref.dtype)


def _vmem_capacity_bytes():
    """Per-TensorCore VMEM capacity; falls back to the v7x value (conservative)."""
    try:
        return int(pltpu.get_tpu_info().vmem_capacity_bytes)
    except Exception:
        return 64 * 1024 * 1024


def _tile_vmem_bytes(tb, t, n, stream_itemsize):
    """Everything the kernel holds per batch tile (review fix: count in-kernel temps)."""
    big_streams = 2 * 2 * tb * t * n * stream_itemsize   # enc_out + enc_feat, double-buffered
    big_temps = 3 * tb * t * n * 4                       # enc_feat upcast, att, e (f32, conservative)
    per_pos = 4 * 2 * tb * t * 4                         # cov, mask, align, next_cov (double-buffered)
    per_row = 4 * 2 * tb * n * 4                         # decoder_hx in + final out (+ slack)
    return big_streams + big_temps + per_pos + per_row


def _weights_vmem_bytes(n):
    """Constant weights are currently double-buffered by the auto-pipeline."""
    lane = max(n, 128)
    big = 2 * (n * n + 2 * n * n) * 4                    # ws_w + lin_w
    small = 2 * 6 * 8 * lane * 4                         # ws_b, wc_w, wc_b, v_w, v_b, lin_b (padded tiles)
    return big + small


def _pick_batch_tile(b, t, n, stream_itemsize, budget_bytes):
    """Largest sublane-aligned divisor of b whose working set fits the budget, while
    always keeping >= 2 grid steps (preferring an even count) so the DMA pipeline and
    v7x's second TensorCore are actually used."""
    divisors = [tb for tb in range(1, b + 1) if b % tb == 0]
    aligned = [tb for tb in divisors if tb % 8 == 0] or divisors
    fitting = [tb for tb in aligned
               if _tile_vmem_bytes(tb, t, n, stream_itemsize) <= budget_bytes]
    if not fitting:
        fitting = [min(aligned)]
    multi = [tb for tb in fitting if b // tb >= 2]
    if multi:
        even = [tb for tb in multi if (b // tb) % 2 == 0]
        return max(even or multi)
    return max(fitting)


def attention_forward(decoder_hx, encoder_outputs, encoder_feature,
                      coverage_vector, mask_tensor, params,
                      *, batch_tile=None, stream_dtype=jnp.bfloat16,
                      compute_dtype=jnp.float32):
    """PyTorch-convention inputs:
         decoder_hx (b, n), encoder_* (t_k, b, n), coverage/mask (t_k, b, 1).
       stream_dtype: dtype used to stream the two big encoder tensors from HBM
         (bf16 default on all generations; accumulation stays f32). Pass
         jnp.float32 / None to keep them in their input dtype.
       compute_dtype: dtype for the att/tanh pipeline (f32 default; bf16 is safe
         only on v6e/v7x)."""
    t_k, b, n = encoder_outputs.shape

    # Layout plumbing only: batch-major activations, lane-dense (b, t) tensors.
    enc_out_bt = jnp.transpose(encoder_outputs, (1, 0, 2))
    enc_feat_bt = jnp.transpose(encoder_feature, (1, 0, 2))
    if stream_dtype is not None and enc_out_bt.dtype != stream_dtype:
        enc_out_bt = enc_out_bt.astype(stream_dtype)
        enc_feat_bt = enc_feat_bt.astype(stream_dtype)
    cov_bt = jnp.transpose(coverage_vector.reshape(t_k, b), (1, 0)).astype(jnp.float32)
    mask_bt = jnp.transpose(mask_tensor.reshape(t_k, b), (1, 0)).astype(jnp.float32)

    stream_itemsize = enc_out_bt.dtype.itemsize

    # Generation-aware VMEM budget/limit derived from the same capacity number
    # (v7x: 64 MiB -> ~48 MiB limit; v5e/v6e: 128 MiB -> ~96 MiB limit).
    capacity = _vmem_capacity_bytes()
    vmem_limit = max(min((capacity * 3) // 4, 100 * 1024 * 1024), 32 * 1024 * 1024)
    headroom = 6 * 1024 * 1024          # Mosaic internal scratch / regalloc slack
    budget = max(vmem_limit - _weights_vmem_bytes(n) - headroom, 1 * 1024 * 1024)

    tb = batch_tile if batch_tile is not None else _pick_batch_tile(
        b, t_k, n, stream_itemsize, budget)
    assert b % tb == 0, (b, tb)
    grid = (b // tb,)

    # Advisory cost estimate so XLA can overlap surrounding work.
    flops = int(
        2 * b * n * n                 # W_s matmul
        + 6 * b * t_k * n             # att adds + coverage outer product
        + 2 * b * t_k * n             # v(e) contraction
        + 2 * b * t_k * n             # content matmul
        + 2 * b * (2 * n) * n         # final linear
    )
    transcendentals = int(b * t_k * n + b * t_k + b * n)
    bytes_accessed = int(
        (enc_out_bt.size + enc_feat_bt.size) * stream_itemsize
        + (4 * b * t_k + 2 * b * n) * 4
        + (3 * n * n + 6 * n + 1) * 4
    )

    in_specs = [
        pl.BlockSpec((tb, n), lambda i: (i, 0)),              # decoder_hx
        pl.BlockSpec((tb, t_k, n), lambda i: (i, 0, 0)),      # encoder_outputs
        pl.BlockSpec((tb, t_k, n), lambda i: (i, 0, 0)),      # encoder_feature
        pl.BlockSpec((tb, t_k), lambda i: (i, 0)),            # coverage
        pl.BlockSpec((tb, t_k), lambda i: (i, 0)),            # mask
        pl.BlockSpec((n, n), lambda i: (0, 0)),               # ws_w
        pl.BlockSpec((1, n), lambda i: (0, 0)),               # ws_b
        pl.BlockSpec((1, n), lambda i: (0, 0)),               # wc_w
        pl.BlockSpec((1, n), lambda i: (0, 0)),               # wc_b
        pl.BlockSpec((1, n), lambda i: (0, 0)),               # v_w
        pl.BlockSpec((1, 1), lambda i: (0, 0)),               # v_b
        pl.BlockSpec((2 * n, n), lambda i: (0, 0)),           # lin_w
        pl.BlockSpec((1, n), lambda i: (0, 0)),               # lin_b
    ]
    out_specs = (
        pl.BlockSpec((tb, n), lambda i: (i, 0)),              # final_dist
        pl.BlockSpec((tb, t_k), lambda i: (i, 0)),            # align
        pl.BlockSpec((tb, t_k), lambda i: (i, 0)),            # next_coverage
    )

    kernel = functools.partial(attention_kernel, compute_dtype=compute_dtype)

    final_dist, align_bt, next_cov_bt = pl.pallas_call(
        kernel,
        out_shape=(
            jax.ShapeDtypeStruct((b, n), jnp.float32),
            jax.ShapeDtypeStruct((b, t_k), jnp.float32),
            jax.ShapeDtypeStruct((b, t_k), jnp.float32),
        ),
        grid=grid,
        in_specs=in_specs,
        out_specs=out_specs,
        # coverage input -> next_coverage output.  Safe: cov_bt is a fresh
        # transposed/cast array made in this wrapper (never a caller buffer).
        input_output_aliases={3: 2},
        compiler_params=pltpu.CompilerParams(
            dimension_semantics=("parallel",),
            vmem_limit_bytes=int(vmem_limit),
        ),
        cost_estimate=pl.CostEstimate(
            flops=flops,
            transcendentals=transcendentals,
            bytes_accessed=bytes_accessed,
        ),
    )(
        decoder_hx, enc_out_bt, enc_feat_bt, cov_bt, mask_bt,
        params["ws_w"], params["ws_b"],
        params["wc_w"], params["wc_b"],
        params["v_w"], params["v_b"],
        params["lin_w"], params["lin_b"],
    )

    # Back to the PyTorch (t_k, b, 1) convention.
    align = jnp.transpose(align_bt, (1, 0))[:, :, None]
    next_cov = jnp.transpose(next_cov_bt, (1, 0))[:, :, None]
    return final_dist, align, next_cov


def attention_reference(decoder_hx, encoder_outputs, encoder_feature,
                        coverage_vector, mask_tensor, params):
    """Pure-JAX reference mirroring the PyTorch forward (coverage enabled)."""
    dec_feature = decoder_hx @ params["ws_w"] + params["ws_b"][0]
    att = encoder_feature + dec_feature[None, :, :]
    cov_feat = (coverage_vector * params["wc_w"][0][None, None, :]
                + params["wc_b"][0][None, None, :])
    att = att + cov_feat
    e = jnp.tanh(att)
    scores = (jnp.sum(e * params["v_w"][0][None, None, :], axis=-1, keepdims=True)
              + params["v_b"][0, 0])
    align = jax.nn.softmax(scores, axis=0) * mask_tensor
    next_cov = coverage_vector + align
    content = jnp.sum(align * encoder_outputs, axis=0)
    concat = jnp.concatenate([content, decoder_hx], axis=1)
    final = jnp.tanh(concat @ params["lin_w"] + params["lin_b"][0])
    return final, align, next_cov


if __name__ == "__main__":
    hidden = 32
    t_k, b = 16, 16

    key = jax.random.PRNGKey(0)
    ks = jax.random.split(key, 12)

    params = {
        "ws_w": jax.random.normal(ks[0], (hidden, hidden), jnp.float32) * 0.1,
        "ws_b": jax.random.normal(ks[1], (1, hidden), jnp.float32) * 0.1,
        "wc_w": jax.random.normal(ks[2], (1, hidden), jnp.float32) * 0.1,
        "wc_b": jax.random.normal(ks[3], (1, hidden), jnp.float32) * 0.1,
        "v_w": jax.random.normal(ks[4], (1, hidden), jnp.float32) * 0.1,
        "v_b": jax.random.normal(ks[5], (1, 1), jnp.float32) * 0.1,
        "lin_w": jax.random.normal(ks[6], (2 * hidden, hidden), jnp.float32) * 0.1,
        "lin_b": jax.random.normal(ks[7], (1, hidden), jnp.float32) * 0.1,
    }

    decoder_hx = jax.random.normal(ks[8], (b, hidden), jnp.float32)
    encoder_outputs = jax.random.normal(ks[9], (t_k, b, hidden), jnp.float32)
    encoder_feature = jax.random.normal(ks[10], (t_k, b, hidden), jnp.float32)
    coverage_vector = jax.random.uniform(ks[11], (t_k, b, 1), jnp.float32) * 0.5
    # Per-batch valid lengths for the mask.
    lens = 6 + (jnp.arange(b) % (t_k - 5))
    mask_tensor = (jnp.arange(t_k)[:, None] < lens[None, :]).astype(jnp.float32)
    mask_tensor = mask_tensor.reshape(t_k, b, 1)

    ref = attention_reference(decoder_hx, encoder_outputs, encoder_feature,
                              coverage_vector, mask_tensor, params)

    # Default path: bf16 streaming of the big encoder tensors, auto batch tile
    # (picker keeps >= 2 grid steps -> exercises the pipelined parallel grid).
    outs_bf16 = attention_forward(decoder_hx, encoder_outputs, encoder_feature,
                                  coverage_vector, mask_tensor, params)
    outs_bf16 = jax.block_until_ready(outs_bf16)

    # f32 streaming path: validates the exact math tightly.
    outs_f32 = attention_forward(decoder_hx, encoder_outputs, encoder_feature,
                                 coverage_vector, mask_tensor, params,
                                 stream_dtype=jnp.float32)
    outs_f32 = jax.block_until_ready(outs_f32)

    for got, want in zip(outs_f32, ref):
        assert got.shape == want.shape, (got.shape, want.shape)
        err = float(jnp.max(jnp.abs(got - want)))
        assert jnp.allclose(got, want, atol=5e-3, rtol=5e-3), ("f32 path", err)

    for got, want in zip(outs_bf16, ref):
        assert got.shape == want.shape, (got.shape, want.shape)
        err = float(jnp.max(jnp.abs(got - want)))
        assert jnp.allclose(got, want, atol=5e-2, rtol=5e-2), ("bf16 path", err)

    print("KERNEL_OK")
</pallas_src>

<mosaic_0001>
module attributes {stable_mosaic.version = 11 : i64} {
  func.func @attention_kernel(%arg0: i32, %arg1: memref<8x32xf32, #tpu.memory_space<vmem>>, %arg2: memref<8x16x32xbf16, #tpu.memory_space<vmem>>, %arg3: memref<8x16x32xbf16, #tpu.memory_space<vmem>>, %arg4: memref<8x16xf32, #tpu.memory_space<vmem>>, %arg5: memref<8x16xf32, #tpu.memory_space<vmem>>, %arg6: memref<32x32xf32, #tpu.memory_space<vmem>>, %arg7: memref<1x32xf32, #tpu.memory_space<vmem>>, %arg8: memref<1x32xf32, #tpu.memory_space<vmem>>, %arg9: memref<1x32xf32, #tpu.memory_space<vmem>>, %arg10: memref<1x32xf32, #tpu.memory_space<vmem>>, %arg11: memref<1x1xf32, #tpu.memory_space<vmem>>, %arg12: memref<64x32xf32, #tpu.memory_space<vmem>>, %arg13: memref<1x32xf32, #tpu.memory_space<vmem>>, %arg14: memref<8x32xf32, #tpu.memory_space<vmem>>, %arg15: memref<8x16xf32, #tpu.memory_space<vmem>>, %arg16: memref<8x16xf32, #tpu.memory_space<vmem>>) attributes {dimension_semantics = [#tpu.dimension_semantics<parallel>], iteration_bounds = array<i64: 2>, scalar_prefetch = 0 : i64, scratch_operands = 0 : i64, tpu.core_type = #tpu.core_type<tc>, window_params = [{transform_indices = @transform_0, window_bounds = array<i64: 8, 32>}, {transform_indices = @transform_1, window_bounds = array<i64: 8, 16, 32>}, {transform_indices = @transform_2, window_bounds = array<i64: 8, 16, 32>}, {transform_indices = @transform_3, window_bounds = array<i64: 8, 16>}, {transform_indices = @transform_4, window_bounds = array<i64: 8, 16>}, {pipeline_mode = #tpu.pipeline_mode<synchronous>, transform_indices = @transform_5, window_bounds = array<i64: 32, 32>}, {pipeline_mode = #tpu.pipeline_mode<synchronous>, transform_indices = @transform_6, window_bounds = array<i64: 1, 32>}, {pipeline_mode = #tpu.pipeline_mode<synchronous>, transform_indices = @transform_7, window_bounds = array<i64: 1, 32>}, {pipeline_mode = #tpu.pipeline_mode<synchronous>, transform_indices = @transform_8, window_bounds = array<i64: 1, 32>}, {pipeline_mode = #tpu.pipeline_mode<synchronous>, transform_indices = @transform_9, window_bounds = array<i64: 1, 32>}, {pipeline_mode = #tpu.pipeline_mode<synchronous>, transform_indices = @transform_10, window_bounds = array<i64: 1, 1>}, {pipeline_mode = #tpu.pipeline_mode<synchronous>, transform_indices = @transform_11, window_bounds = array<i64: 64, 32>}, {pipeline_mode = #tpu.pipeline_mode<synchronous>, transform_indices = @transform_12, window_bounds = array<i64: 1, 32>}, {transform_indices = @transform_13, window_bounds = array<i64: 8, 32>}, {transform_indices = @transform_14, window_bounds = array<i64: 8, 16>}, {transform_indices = @transform_15, window_bounds = array<i64: 8, 16>}]} {
    %c0 = arith.constant 0 : index
    %c0_0 = arith.constant 0 : index
    %0 = vector.load %arg1[%c0, %c0_0] : memref<8x32xf32, #tpu.memory_space<vmem>>, vector<8x32xf32>
    %c0_1 = arith.constant 0 : index
    %c0_2 = arith.constant 0 : index
    %1 = vector.load %arg4[%c0_1, %c0_2] : memref<8x16xf32, #tpu.memory_space<vmem>>, vector<8x16xf32>
    %c0_3 = arith.constant 0 : index
    %c0_4 = arith.constant 0 : index
    %2 = vector.load %arg5[%c0_3, %c0_4] : memref<8x16xf32, #tpu.memory_space<vmem>>, vector<8x16xf32>
    %c0_5 = arith.constant 0 : index
    %c0_6 = arith.constant 0 : index
    %3 = vector.load %arg6[%c0_5, %c0_6] : memref<32x32xf32, #tpu.memory_space<vmem>>, vector<32x32xf32>
    %cst = arith.constant dense<0.000000e+00> : vector<8x32xf32>
    %4 = tpu.matmul %0, %3, %cst {dimension_numbers = #tpu.dot_dimension_numbers<[1], [0], [0], [1], [0, 0, 1, 1], [], []>} : vector<8x32xf32>, vector<32x32xf32>, vector<8x32xf32> -> vector<8x32xf32>
    %c0_7 = arith.constant 0 : index
    %c0_8 = arith.constant 0 : index
    %5 = vector.load %arg7[%c0_7, %c0_8] : memref<1x32xf32, #tpu.memory_space<vmem>>, vector<1x32xf32>
    %6 = vector.broadcast %5 : vector<1x32xf32> to vector<8x32xf32>
    %7 = arith.addf %4, %6 : vector<8x32xf32>
    %c0_9 = arith.constant 0 : index
    %c0_10 = arith.constant 0 : index
    %8 = vector.load %arg9[%c0_9, %c0_10] : memref<1x32xf32, #tpu.memory_space<vmem>>, vector<1x32xf32>
    %9 = vector.broadcast %8 : vector<1x32xf32> to vector<8x32xf32>
    %10 = arith.addf %7, %9 : vector<8x32xf32>
    %c0_11 = arith.constant 0 : index
    %c0_12 = arith.constant 0 : index
    %c0_13 = arith.constant 0 : index
    %11 = vector.load %arg3[%c0_11, %c0_12, %c0_13] : memref<8x16x32xbf16, #tpu.memory_space<vmem>>, vector<8x16x32xbf16>
    %12 = arith.extf %11 : vector<8x16x32xbf16> to vector<8x16x32xf32>
    %13 = vector.shape_cast %10 : vector<8x32xf32> to vector<8x1x32xf32>
    %14 = vector.broadcast %13 : vector<8x1x32xf32> to vector<8x16x32xf32>
    %15 = arith.addf %12, %14 : vector<8x16x32xf32>
    %16 = vector.shape_cast %1 : vector<8x16xf32> to vector<8x16x1xf32>
    %c0_14 = arith.constant 0 : index
    %c0_15 = arith.constant 0 : index
    %17 = vector.load %arg8[%c0_14, %c0_15] : memref<1x32xf32, #tpu.memory_space<vmem>>, vector<1x32xf32>
    %18 = vector.shape_cast %17 : vector<1x32xf32> to vector<1x1x32xf32>
    %19 = vector.broadcast %16 : vector<8x16x1xf32> to vector<8x16x32xf32>
    %20 = vector.broadcast %18 : vector<1x1x32xf32> to vector<8x16x32xf32>
    %21 = arith.mulf %19, %20 : vector<8x16x32xf32>
    %22 = arith.addf %15, %21 : vector<8x16x32xf32>
    %23 = math.tanh %22 : vector<8x16x32xf32>
    %c0_16 = arith.constant 0 : index
    %c0_17 = arith.constant 0 : index
    %24 = vector.load %arg10[%c0_16, %c0_17] : memref<1x32xf32, #tpu.memory_space<vmem>>, vector<1x32xf32>
    %25 = vector.shape_cast %24 : vector<1x32xf32> to vector<1x1x32xf32>
    %26 = vector.broadcast %25 : vector<1x1x32xf32> to vector<8x16x32xf32>
    %27 = arith.mulf %23, %26 : vector<8x16x32xf32>
    %cst_18 = arith.constant dense<0.000000e+00> : vector<8x16xf32>
    %28 = vector.multi_reduction <add>, %27, %cst_18 [2] : vector<8x16x32xf32> to vector<8x16xf32>
    %c0_19 = arith.constant 0 : index
    %c0_20 = arith.constant 0 : index
    %29 = vector.load %arg11[%c0_19, %c0_20] : memref<1x1xf32, #tpu.memory_space<vmem>>, vector<1x1xf32>
    %30 = vector.broadcast %29 : vector<1x1xf32> to vector<8x16xf32>
    %31 = arith.addf %28, %30 : vector<8x16xf32>
    %cst_21 = arith.constant dense<0xFF800000> : vector<8xf32>
    %32 = vector.multi_reduction <maximumf>, %31, %cst_21 [1] : vector<8x16xf32> to vector<8xf32>
    %33 = vector.shape_cast %32 : vector<8xf32> to vector<8x1xf32>
    %34 = vector.broadcast %33 : vector<8x1xf32> to vector<8x16xf32>
    %35 = arith.subf %31, %34 : vector<8x16xf32>
    %36 = math.exp %35 : vector<8x16xf32>
    %cst_22 = arith.constant dense<0.000000e+00> : vector<8xf32>
    %37 = vector.multi_reduction <add>, %36, %cst_22 [1] : vector<8x16xf32> to vector<8xf32>
    %38 = vector.shape_cast %37 : vector<8xf32> to vector<8x1xf32>
    %39 = vector.broadcast %38 : vector<8x1xf32> to vector<8x16xf32>
    %40 = arith.divf %36, %39 : vector<8x16xf32>
    %41 = arith.mulf %40, %2 : vector<8x16xf32>
    %c0_23 = arith.constant 0 : index
    %c0_24 = arith.constant 0 : index
    %42 = vector.load %arg15[%c0_23, %c0_24] : memref<8x16xf32, #tpu.memory_space<vmem>>, vector<8x16xf32>
    tpu.vector_store %arg15[%c0_23, %c0_24], %41 {strides = array<i32>} : memref<8x16xf32, #tpu.memory_space<vmem>>, vector<8x16xf32>,
    %43 = arith.addf %1, %41 : vector<8x16xf32>
    %c0_25 = arith.constant 0 : index
    %c0_26 = arith.constant 0 : index
    %44 = vector.load %arg16[%c0_25, %c0_26] : memref<8x16xf32, #tpu.memory_space<vmem>>, vector<8x16xf32>
    tpu.vector_store %arg16[%c0_25, %c0_26], %43 {strides = array<i32>} : memref<8x16xf32, #tpu.memory_space<vmem>>, vector<8x16xf32>,
    %c0_27 = arith.constant 0 : index
    %c0_28 = arith.constant 0 : index
    %c0_29 = arith.constant 0 : index
    %45 = vector.load %arg2[%c0_27, %c0_28, %c0_29] : memref<8x16x32xbf16, #tpu.memory_space<vmem>>, vector<8x16x32xbf16>
    %46 = vector.shape_cast %41 : vector<8x16xf32> to vector<8x1x16xf32>
    %47 = arith.truncf %46 : vector<8x1x16xf32> to vector<8x1x16xbf16>
    "tpu.trace_start"() <{level = 10 : i32, message = "bqt,btn->bqn"}> : () -> ()
    %cst_30 = arith.constant dense<0.000000e+00> : vector<8x1x32xf32>
    %48 = tpu.matmul %47, %45, %cst_30 {dimension_numbers = #tpu.dot_dimension_numbers<[2], [1], [1], [2], [0, 0, 0, 1, 1, 2], [0], [0]>} : vector<8x1x16xbf16>, vector<8x16x32xbf16>, vector<8x1x32xf32> -> vector<8x1x32xf32>
    "tpu.trace_stop"() : () -> ()
    %49 = vector.shape_cast %48 : vector<8x1x32xf32> to vector<8x32xf32>
    %c0_31 = arith.constant 0 : index
    %c0_32 = arith.constant 0 : index
    %50 = vector.load %arg12[%c0_31, %c0_32] : memref<64x32xf32, #tpu.memory_space<vmem>>, vector<32x32xf32>
    %c32 = arith.constant 32 : index
    %c0_33 = arith.constant 0 : index
    %51 = vector.load %arg12[%c32, %c0_33] : memref<64x32xf32, #tpu.memory_space<vmem>>, vector<32x32xf32>
    %cst_34 = arith.constant dense<0.000000e+00> : vector<8x32xf32>
    %52 = tpu.matmul %49, %50, %cst_34 {dimension_numbers = #tpu.dot_dimension_numbers<[1], [0], [0], [1], [0, 0, 1, 1], [], []>} : vector<8x32xf32>, vector<32x32xf32>, vector<8x32xf32> -> vector<8x32xf32>
    %cst_35 = arith.constant dense<0.000000e+00> : vector<8x32xf32>
    %53 = tpu.matmul %0, %51, %cst_35 {dimension_numbers = #tpu.dot_dimension_numbers<[1], [0], [0], [1], [0, 0, 1, 1], [], []>} : vector<8x32xf32>, vector<32x32xf32>, vector<8x32xf32> -> vector<8x32xf32>
    %54 = arith.addf %52, %53 : vector<8x32xf32>
    %c0_36 = arith.constant 0 : index
    %c0_37 = arith.constant 0 : index
    %55 = vector.load %arg13[%c0_36, %c0_37] : memref<1x32xf32, #tpu.memory_space<vmem>>, vector<1x32xf32>
    %56 = vector.broadcast %55 : vector<1x32xf32> to vector<8x32xf32>
    %57 = arith.addf %54, %56 : vector<8x32xf32>
    %58 = math.tanh %57 : vector<8x32xf32>
    %c0_38 = arith.constant 0 : index
    %c0_39 = arith.constant 0 : index
    %59 = vector.load %arg14[%c0_38, %c0_39] : memref<8x32xf32, #tpu.memory_space<vmem>>, vector<8x32xf32>
    tpu.vector_store %arg14[%c0_38, %c0_39], %58 {strides = array<i32>} : memref<8x32xf32, #tpu.memory_space<vmem>>, vector<8x32xf32>,
    return
  }
  func.func @transform_0(%arg0: i32) -> (i32, i32) {
    %c0_i32 = arith.constant 0 : i32
    %c0_i32_0 = arith.constant 0 : i32
    return %arg0, %c0_i32 : i32, i32
  }
  func.func @transform_1(%arg0: i32) -> (i32, i32, i32) {
    %c0_i32 = arith.constant 0 : i32
    %c0_i32_0 = arith.constant 0 : i32
    %c0_i32_1 = arith.constant 0 : i32
    return %arg0, %c0_i32, %c0_i32_0 : i32, i32, i32
  }
  func.func @transform_2(%arg0: i32) -> (i32, i32, i32) {
    %c0_i32 = arith.constant 0 : i32
    %c0_i32_0 = arith.constant 0 : i32
    %c0_i32_1 = arith.constant 0 : i32
    return %arg0, %c0_i32, %c0_i32_0 : i32, i32, i32
  }
  func.func @transform_3(%arg0: i32) -> (i32, i32) {
    %c0_i32 = arith.constant 0 : i32
    %c0_i32_0 = arith.constant 0 : i32
    return %arg0, %c0_i32 : i32, i32
  }
  func.func @transform_4(%arg0: i32) -> (i32, i32) {
    %c0_i32 = arith.constant 0 : i32
    %c0_i32_0 = arith.constant 0 : i32
    return %arg0, %c0_i32 : i32, i32
  }
  func.func @transform_5(%arg0: i32) -> (i32, i32) {
    %c0_i32 = arith.constant 0 : i32
    %c0_i32_0 = arith.constant 0 : i32
    %c0_i32_1 = arith.constant 0 : i32
    return %c0_i32, %c0_i32_0 : i32, i32
  }
  func.func @transform_6(%arg0: i32) -> (i32, i32) {
    %c0_i32 = arith.constant 0 : i32
    %c0_i32_0 = arith.constant 0 : i32
    %c0_i32_1 = arith.constant 0 : i32
    return %c0_i32, %c0_i32_0 : i32, i32
  }
  func.func @transform_7(%arg0: i32) -> (i32, i32) {
    %c0_i32 = arith.constant 0 : i32
    %c0_i32_0 = arith.constant 0 : i32
    %c0_i32_1 = arith.constant 0 : i32
    return %c0_i32, %c0_i32_0 : i32, i32
  }
  func.func @transform_8(%arg0: i32) -> (i32, i32) {
    %c0_i32 = arith.constant 0 : i32
    %c0_i32_0 = arith.constant 0 : i32
    %c0_i32_1 = arith.constant 0 : i32
    return %c0_i32, %c0_i32_0 : i32, i32
  }
  func.func @transform_9(%arg0: i32) -> (i32, i32) {
    %c0_i32 = arith.constant 0 : i32
    %c0_i32_0 = arith.constant 0 : i32
    %c0_i32_1 = arith.constant 0 : i32
    return %c0_i32, %c0_i32_0 : i32, i32
  }
  func.func @transform_10(%arg0: i32) -> (i32, i32) {
    %c0_i32 = arith.constant 0 : i32
    %c0_i32_0 = arith.constant 0 : i32
    %c0_i32_1 = arith.constant 0 : i32
    return %c0_i32, %c0_i32_0 : i32, i32
  }
  func.func @transform_11(%arg0: i32) -> (i32, i32) {
    %c0_i32 = arith.constant 0 : i32
    %c0_i32_0 = arith.constant 0 : i32
    %c0_i32_1 = arith.constant 0 : i32
    return %c0_i32, %c0_i32_0 : i32, i32
  }
  func.func @transform_12(%arg0: i32) -> (i32, i32) {
    %c0_i32 = arith.constant 0 : i32
    %c0_i32_0 = arith.constant 0 : i32
    %c0_i32_1 = arith.constant 0 : i32
    return %c0_i32, %c0_i32_0 : i32, i32
  }
  func.func @transform_13(%arg0: i32) -> (i32, i32) {
    %c0_i32 = arith.constant 0 : i32
    %c0_i32_0 = arith.constant 0 : i32
    return %arg0, %c0_i32 : i32, i32
  }
  func.func @transform_14(%arg0: i32) -> (i32, i32) {
    %c0_i32 = arith.constant 0 : i32
    %c0_i32_0 = arith.constant 0 : i32
    return %arg0, %c0_i32 : i32, i32
  }
  func.func @transform_15(%arg0: i32) -> (i32, i32) {
    %c0_i32 = arith.constant 0 : i32
    %c0_i32_0 = arith.constant 0 : i32
    return %arg0, %c0_i32 : i32, i32
  }
}

</mosaic_0001>

<llo_original>
// kernel: tpu_custom_call.1
$region0: #{tpu_custom_call.1}
  #allocation0 [shape = 'u32[]', space=smem, size = 0x4, offset = 0x4, fixed_abs, tag = 'smem constant byte address 0x4 - core index']
  #allocation1 [shape = 'u32[144,128]{1,0:T(1,128)}', space=vmem, size = 0x12000, scoped, tag = 'internal scratch']
  #allocation2 [shape = 'f32[1,1]{1,0:T(1,128)S(1)}', space=vmem, size = 0x200, scoped, tag = 'scoped memory for tpu_custom_call.1']
  %s0 = inlined_call_operand.vmem [shape: f32[16,32], index: 0, kind: input, shape index: {}]
  %s1 = inlined_call_operand.vmem [shape: bf16[16,16,32], index: 1, kind: input, shape index: {}]
  %s2 = inlined_call_operand.hbm [shape: bf16[16,16,32], index: 2, kind: input, shape index: {}]
  %s3 = inlined_call_operand.hbm [shape: f32[16,16], index: 3, kind: input, shape index: {}, may-alias: {3,15}]
  %s4 = inlined_call_operand.hbm [shape: f32[16,16], index: 4, kind: input, shape index: {}]
  %s5 = inlined_call_operand.vmem [shape: f32[32,32], index: 5, kind: input, shape index: {}]
  %s6 = inlined_call_operand.vmem [shape: f32[1,32], index: 6, kind: input, shape index: {}]
  %s7 = inlined_call_operand.hbm [shape: f32[1,32], index: 7, kind: input, shape index: {}]
  %s8 = inlined_call_operand.hbm [shape: f32[1,32], index: 8, kind: input, shape index: {}]
  %s9 = inlined_call_operand.hbm [shape: f32[1,32], index: 9, kind: input, shape index: {}]
  %s10 = inlined_call_operand.<no memory space> [shape: f32[1,1], index: 10, kind: input, shape index: {}]
  %s11 = inlined_call_operand.vmem [shape: f32[64,32], index: 11, kind: input, shape index: {}]
  %s12 = inlined_call_operand.hbm [shape: f32[1,32], index: 12, kind: input, shape index: {}]
  %s13 = inlined_call_operand.hbm [shape: f32[16,32], index: 13, kind: output, shape index: {0}]
  %s14 = inlined_call_operand.hbm [shape: f32[16,16], index: 14, kind: output, shape index: {1}]
  %s15 = inlined_call_operand.hbm [shape: f32[16,16], index: 15, kind: output, shape index: {2}, may-alias: {3,15}]
  %16 = xla_tuple %s13, %s14, %s15
  %s17 = sld [smem:[#allocation0]]
  $region129: #{tpu_custom_call.1} parent=0
    _
  %s19 = ssub.s32 1, %s17
  %s20 = scalar_select 0, %s19, %s17
  %v21 = vstv %s10
  %22 = vst [vmem:[#allocation2] sm:$0x1] %v21
  $region1: #{tpu_custom_call.1} parent=0
    #allocation3 [shape = 'u8[65536]{0}', space=vmem, size = 0x10000, scoped, tag = 'input window, operand 2']
    #allocation4 [shape = 's32[2]{0}', space=sflag, size = 0x8, scoped, tag = 'scoped memory for tpu_custom_call.1']
    #allocation5 [shape = 's32[2]{0}', space=sflag, size = 0x8, scoped, tag = 'scoped memory for tpu_custom_call.1']
    #allocation6 [shape = 'u8[8192]{0}', space=vmem, size = 0x2000, scoped, tag = 'input window, operand 3']
    #allocation7 [shape = 's32[2]{0}', space=sflag, size = 0x8, scoped, tag = 'scoped memory for tpu_custom_call.1']
    #allocation8 [shape = 'u8[8192]{0}', space=vmem, size = 0x2000, scoped, tag = 'input window, operand 4']
    #allocation9 [shape = 'u8[512]{0}', space=vmem, size = 0x400, scoped, tag = 'input window, operand 7, single buffered']
    #allocation10 [shape = 's32[1]{0}', space=sflag, size = 0x4, scoped, tag = 'scoped memory for tpu_custom_call.1']
    #allocation11 [shape = 'u8[512]{0}', space=vmem, size = 0x400, scoped, tag = 'input window, operand 8, single buffered']
    #allocation12 [shape = 'u8[512]{0}', space=vmem, size = 0x400, scoped, tag = 'input window, operand 9, single buffered']
    #allocation13 [shape = 's32[1]{0}', space=sflag, size = 0x4, scoped, tag = 'scoped memory for tpu_custom_call.1']
    #allocation14 [shape = 'u8[512]{0}', space=vmem, size = 0x400, scoped, tag = 'input window, operand 12, single buffered']
    #allocation15 [shape = 'u8[8192]{0}', space=vmem, size = 0x2000, scoped, tag = 'output window, operand 0']
    #allocation16 [shape = 'u8[8192]{0}', space=vmem, size = 0x2000, scoped, tag = 'output window, operand 1']
    #allocation17 [shape = 's32[2]{0}', space=sflag, size = 0x8, scoped, tag = 'scoped memory for tpu_custom_call.1']
    #allocation18 [shape = 'u8[8192]{0}', space=vmem, size = 0x2000, scoped, tag = 'output window, operand 2']
    %23 = vsyncpa [#allocation4], 0
    %s24 = scalar_lea.sflag [#allocation4], 1
    %25 = vsyncpa %s24, 0
    %26 = vsyncpa [#allocation7], 0
    %s27 = scalar_lea.sflag [#allocation7], 1
    %28 = vsyncpa %s27, 0
    %29 = vsyncpa [#allocation10], 0
    %30 = vsyncpa [#allocation13], 0
    %31 = vsyncpa [#allocation5], 0
    %s32 = scalar_lea.sflag [#allocation5], 1
    %33 = vsyncpa %s32, 0
    %34 = vsyncpa [#allocation17], 0
    %s35 = scalar_lea.sflag [#allocation17], 1
    %36 = vsyncpa %s35, 0
    loop: start=0, step=1, limit=4
    $region2: #{tpu_custom_call.1} parent=1 // loop_pre_header
      _
    $region3: #{tpu_custom_call.1} parent=1 // loop_header
      %s38 = sphi 0, %s42
      %p39 = scmp.ge.s32.totalorder %s38, 4
      %s48 = sphi 0, %s50
      %s51 = sphi 0, %s48
      %s52 = sphi 0, %s51
      %s68 = sphi 0, %s52
      %s74 = sphi 0, %s76
      %s77 = sphi 0, %s74
      %s78 = sphi 0, %s77
      %s94 = sphi 0, %s78
      %s100 = sphi 0, %s102
      %s103 = sphi 0, %s100
      %s104 = sphi 0, %s103
      %s120 = sphi 0, %s104
      %s126 = sphi 0, %s128
      %s129 = sphi 0, %s126
      %s130 = sphi 0, %s129
      %s146 = sphi 0, %s130
      %s152 = sphi 0, %s154
      %s155 = sphi 0, %s152
      %s156 = sphi 0, %s155
      %s172 = sphi 0, %s156
      %s176 = sphi 0, %s176
      %s178 = sphi 0, %s176
      %s179 = sphi 0, %s178
      %s193 = sphi 0, %s179
      %s197 = sphi 0, %s197
      %s199 = sphi 0, %s197
      %s200 = sphi 0, %s199
      %s214 = sphi 0, %s200
      %s218 = sphi 0, %s218
      %s220 = sphi 0, %s218
      %s221 = sphi 0, %s220
      %s235 = sphi 0, %s221
      %s239 = sphi 0, %s239
      %s241 = sphi 0, %s239
      %s242 = sphi 0, %s241
      %s256 = sphi 0, %s242
      %s260 = sphi 0, %s260
      %s262 = sphi 0, %s260
      %s263 = sphi 0, %s262
      %s277 = sphi 0, %s263
      %s281 = sphi 0, %s281
      %s283 = sphi 0, %s281
      %s284 = sphi 0, %s283
      %s298 = sphi 0, %s284
      %s302 = sphi 0, %s302
      %s304 = sphi 0, %s302
      %s305 = sphi 0, %s304
      %s319 = sphi 0, %s305
      %s323 = sphi 0, %s323
      %s325 = sphi 0, %s323
      %s326 = sphi 0, %s325
      %s340 = sphi 0, %s326
      %s346 = sphi 0, %s348
      %s349 = sphi 0, %s346
      %s350 = sphi 0, %s349
      %s366 = sphi 0, %s350
      %s372 = sphi 0, %s374
      %s375 = sphi 0, %s372
      %s376 = sphi 0, %s375
      %s392 = sphi 0, %s376
      %s398 = sphi 0, %s400
      %s401 = sphi 0, %s398
      %s402 = sphi 0, %s401
      %s418 = sphi 0, %s402
    $region4: #{tpu_custom_call.1} parent=1 // loop_header_branch
      %41 = sbr.rel (%p39) target = $region8
    $region5: #{tpu_custom_call.1} parent=1 // loop_body
      %s43 = ssub.s32 %s38, 1
      %s44 = ssub.s32 %s38, 2
      %s45 = sadd.s32 %s38, 1
      %s46 = ssub.s32 %s38, %s45
      %p47 = scmp.eq.s32.totalorder %s46, 0
      %s49 = sadd.s32 %s48, 1
      %s50 = scalar_select %p47, %s48, %s49
      %p53 = pneg %p47
      %p54 = scmp.eq.s32.totalorder %s38, 1
      %p55 = por %p53, %p54
      %p56 = scmp.ne.s32.totalorder %s48, %s51
      %p57 = scmp.eq.s32.totalorder %s38, 0
      %p58 = por %p56, %p57
      %p59 = scmp.ne.s32.totalorder %s48, %s51
      %p60 = scmp.eq.s32.totalorder %s43, 1
      %p61 = por %p59, %p60
      %p62 = scmp.ne.s32.totalorder %s51, %s52
      %p63 = scmp.eq.s32.totalorder %s43, 0
      %p64 = por %p62, %p63
      %p65 = scmp.ne.s32.totalorder %s51, %s52
      %p66 = scmp.eq.s32.totalorder %s44, 1
      %p67 = por %p65, %p66
      %p69 = scmp.ne.s32.totalorder %s52, %s68
      %p70 = scmp.eq.s32.totalorder %s44, 0
      %p71 = por %p69, %p70
      %s72 = ssub.s32 %s38, %s45
      %p73 = scmp.eq.s32.totalorder %s72, 0
      %s75 = sadd.s32 %s74, 1
      %s76 = scalar_select %p73, %s74, %s75
      %p79 = pneg %p73
      %p80 = scmp.eq.s32.totalorder %s38, 1
      %p81 = por %p79, %p80
      %p82 = scmp.ne.s32.totalorder %s74, %s77
      %p83 = scmp.eq.s32.totalorder %s38, 0
      %p84 = por %p82, %p83
      %p85 = scmp.ne.s32.totalorder %s74, %s77
      %p86 = scmp.eq.s32.totalorder %s43, 1
      %p87 = por %p85, %p86
      %p88 = scmp.ne.s32.totalorder %s77, %s78
      %p89 = scmp.eq.s32.totalorder %s43, 0
      %p90 = por %p88, %p89
      %p91 = scmp.ne.s32.totalorder %s77, %s78
      %p92 = scmp.eq.s32.totalorder %s44, 1
      %p93 = por %p91, %p92
      %p95 = scmp.ne.s32.totalorder %s78, %s94
      %p96 = scmp.eq.s32.totalorder %s44, 0
      %p97 = por %p95, %p96
      %s98 = ssub.s32 %s38, %s45
      %p99 = scmp.eq.s32.totalorder %s98, 0
      %s101 = sadd.s32 %s100, 1
      %s102 = scalar_select %p99, %s100, %s101
      %p105 = pneg %p99
      %p106 = scmp.eq.s32.totalorder %s38, 1
      %p107 = por %p105, %p106
      %p108 = scmp.ne.s32.totalorder %s100, %s103
      %p109 = scmp.eq.s32.totalorder %s38, 0
      %p110 = por %p108, %p109
      %p111 = scmp.ne.s32.totalorder %s100, %s103
      %p112 = scmp.eq.s32.totalorder %s43, 1
      %p113 = por %p111, %p112
      %p114 = scmp.ne.s32.totalorder %s103, %s104
      %p115 = scmp.eq.s32.totalorder %s43, 0
      %p116 = por %p114, %p115
      %p117 = scmp.ne.s32.totalorder %s103, %s104
      %p118 = scmp.eq.s32.totalorder %s44, 1
      %p119 = por %p117, %p118
      %p121 = scmp.ne.s32.totalorder %s104, %s120
      %p122 = scmp.eq.s32.totalorder %s44, 0
      %p123 = por %p121, %p122
      %s124 = ssub.s32 %s38, %s45
      %p125 = scmp.eq.s32.totalorder %s124, 0
      %s127 = sadd.s32 %s126, 1
      %s128 = scalar_select %p125, %s126, %s127
      %p131 = pneg %p125
      %p132 = scmp.eq.s32.totalorder %s38, 1
      %p133 = por %p131, %p132
      %p134 = scmp.ne.s32.totalorder %s126, %s129
      %p135 = scmp.eq.s32.totalorder %s38, 0
      %p136 = por %p134, %p135
      %p137 = scmp.ne.s32.totalorder %s126, %s129
      %p138 = scmp.eq.s32.totalorder %s43, 1
      %p139 = por %p137, %p138
      %p140 = scmp.ne.s32.totalorder %s129, %s130
      %p141 = scmp.eq.s32.totalorder %s43, 0
      %p142 = por %p140, %p141
      %p143 = scmp.ne.s32.totalorder %s129, %s130
      %p144 = scmp.eq.s32.totalorder %s44, 1
      %p145 = por %p143, %p144
      %p147 = scmp.ne.s32.totalorder %s130, %s146
      %p148 = scmp.eq.s32.totalorder %s44, 0
      %p149 = por %p147, %p148
      %s150 = ssub.s32 %s38, %s45
      %p151 = scmp.eq.s32.totalorder %s150, 0
      %s153 = sadd.s32 %s152, 1
      %s154 = scalar_select %p151, %s152, %s153
      %p157 = pneg %p151
      %p158 = scmp.eq.s32.totalorder %s38, 1
      %p159 = por %p157, %p158
      %p160 = scmp.ne.s32.totalorder %s152, %s155
      %p161 = scmp.eq.s32.totalorder %s38, 0
      %p162 = por %p160, %p161
      %p163 = scmp.ne.s32.totalorder %s152, %s155
      %p164 = scmp.eq.s32.totalorder %s43, 1
      %p165 = por %p163, %p164
      %p166 = scmp.ne.s32.totalorder %s155, %s156
      %p167 = scmp.eq.s32.totalorder %s43, 0
      %p168 = por %p166, %p167
      %p169 = scmp.ne.s32.totalorder %s155, %s156
      %p170 = scmp.eq.s32.totalorder %s44, 1
      %p171 = por %p169, %p170
      %p173 = scmp.ne.s32.totalorder %s156, %s172
      %p174 = scmp.eq.s32.totalorder %s44, 0
      %p175 = por %p173, %p174
      %s177 = sadd.s32 %s176, 1
      %p180 = scmp.eq.s32.totalorder %s38, 1
      %p181 = scmp.ne.s32.totalorder %s176, %s178
      %p182 = scmp.eq.s32.totalorder %s38, 0
      %p183 = por %p181, %p182
      %p184 = scmp.ne.s32.totalorder %s176, %s178
      %p185 = scmp.eq.s32.totalorder %s43, 1
      %p186 = por %p184, %p185
      %p187 = scmp.ne.s32.totalorder %s178, %s179
      %p188 = scmp.eq.s32.totalorder %s43, 0
      %p189 = por %p187, %p188
      %p190 = scmp.ne.s32.totalorder %s178, %s179
      %p191 = scmp.eq.s32.totalorder %s44, 1
      %p192 = por %p190, %p191
      %p194 = scmp.ne.s32.totalorder %s179, %s193
      %p195 = scmp.eq.s32.totalorder %s44, 0
      %p196 = por %p194, %p195
      %s198 = sadd.s32 %s197, 1
      %p201 = scmp.eq.s32.totalorder %s38, 1
      %p202 = scmp.ne.s32.totalorder %s197, %s199
      %p203 = scmp.eq.s32.totalorder %s38, 0
      %p204 = por %p202, %p203
      %p205 = scmp.ne.s32.totalorder %s197, %s199
      %p206 = scmp.eq.s32.totalorder %s43, 1
      %p207 = por %p205, %p206
      %p208 = scmp.ne.s32.totalorder %s199, %s200
      %p209 = scmp.eq.s32.totalorder %s43, 0
      %p210 = por %p208, %p209
      %p211 = scmp.ne.s32.totalorder %s199, %s200
      %p212 = scmp.eq.s32.totalorder %s44, 1
      %p213 = por %p211, %p212
      %p215 = scmp.ne.s32.totalorder %s200, %s214
      %p216 = scmp.eq.s32.totalorder %s44, 0
      %p217 = por %p215, %p216
      %s219 = sadd.s32 %s218, 1
      %p222 = scmp.eq.s32.totalorder %s38, 1
      %p223 = scmp.ne.s32.totalorder %s218, %s220
      %p224 = scmp.eq.s32.totalorder %s38, 0
      %p225 = por %p223, %p224
      %p226 = scmp.ne.s32.totalorder %s218, %s220
      %p227 = scmp.eq.s32.totalorder %s43, 1
      %p228 = por %p226, %p227
      %p229 = scmp.ne.s32.totalorder %s220, %s221
      %p230 = scmp.eq.s32.totalorder %s43, 0
      %p231 = por %p229, %p230
      %p232 = scmp.ne.s32.totalorder %s220, %s221
      %p233 = scmp.eq.s32.totalorder %s44, 1
      %p234 = por %p232, %p233
      %p236 = scmp.ne.s32.totalorder %s221, %s235
      %p237 = scmp.eq.s32.totalorder %s44, 0
      %p238 = por %p236, %p237
      %s240 = sadd.s32 %s239, 1
      %p243 = scmp.eq.s32.totalorder %s38, 1
      %p244 = scmp.ne.s32.totalorder %s239, %s241
      %p245 = scmp.eq.s32.totalorder %s38, 0
      %p246 = por %p244, %p245
      %p247 = scmp.ne.s32.totalorder %s239, %s241
      %p248 = scmp.eq.s32.totalorder %s43, 1
      %p249 = por %p247, %p248
      %p250 = scmp.ne.s32.totalorder %s241, %s242
      %p251 = scmp.eq.s32.totalorder %s43, 0
      %p252 = por %p250, %p251
      %p253 = scmp.ne.s32.totalorder %s241, %s242
      %p254 = scmp.eq.s32.totalorder %s44, 1
      %p255 = por %p253, %p254
      %p257 = scmp.ne.s32.totalorder %s242, %s256
      %p258 = scmp.eq.s32.totalorder %s44, 0
      %p259 = por %p257, %p258
      %s261 = sadd.s32 %s260, 1
      %p264 = scmp.eq.s32.totalorder %s38, 1
      %p265 = scmp.ne.s32.totalorder %s260, %s262
      %p266 = scmp.eq.s32.totalorder %s38, 0
      %p267 = por %p265, %p266
      %p268 = scmp.ne.s32.totalorder %s260, %s262
      %p269 = scmp.eq.s32.totalorder %s43, 1
      %p270 = por %p268, %p269
      %p271 = scmp.ne.s32.totalorder %s262, %s263
      %p272 = scmp.eq.s32.totalorder %s43, 0
      %p273 = por %p271, %p272
      %p274 = scmp.ne.s32.totalorder %s262, %s263
      %p275 = scmp.eq.s32.totalorder %s44, 1
      %p276 = por %p274, %p275
      %p278 = scmp.ne.s32.totalorder %s263, %s277
      %p279 = scmp.eq.s32.totalorder %s44, 0
      %p280 = por %p278, %p279
      %s282 = sadd.s32 %s281, 1
      %p285 = scmp.eq.s32.totalorder %s38, 1
      %p286 = scmp.ne.s32.totalorder %s281, %s283
      %p287 = scmp.eq.s32.totalorder %s38, 0
      %p288 = por %p286, %p287
      %p289 = scmp.ne.s32.totalorder %s281, %s283
      %p290 = scmp.eq.s32.totalorder %s43, 1
      %p291 = por %p289, %p290
      %p292 = scmp.ne.s32.totalorder %s283, %s284
      %p293 = scmp.eq.s32.totalorder %s43, 0
      %p294 = por %p292, %p293
      %p295 = scmp.ne.s32.totalorder %s283, %s284
      %p296 = scmp.eq.s32.totalorder %s44, 1
      %p297 = por %p295, %p296
      %p299 = scmp.ne.s32.totalorder %s284, %s298
      %p300 = scmp.eq.s32.totalorder %s44, 0
      %p301 = por %p299, %p300
      %s303 = sadd.s32 %s302, 1
      %p306 = scmp.eq.s32.totalorder %s38, 1
      %p307 = scmp.ne.s32.totalorder %s302, %s304
      %p308 = scmp.eq.s32.totalorder %s38, 0
      %p309 = por %p307, %p308
      %p310 = scmp.ne.s32.totalorder %s302, %s304
      %p311 = scmp.eq.s32.totalorder %s43, 1
      %p312 = por %p310, %p311
      %p313 = scmp.ne.s32.totalorder %s304, %s305
      %p314 = scmp.eq.s32.totalorder %s43, 0
      %p315 = por %p313, %p314
      %p316 = scmp.ne.s32.totalorder %s304, %s305
      %p317 = scmp.eq.s32.totalorder %s44, 1
      %p318 = por %p316, %p317
      %p320 = scmp.ne.s32.totalorder %s305, %s319
      %p321 = scmp.eq.s32.totalorder %s44, 0
      %p322 = por %p320, %p321
      %s324 = sadd.s32 %s323, 1
      %p327 = scmp.eq.s32.totalorder %s38, 1
      %p328 = scmp.ne.s32.totalorder %s323, %s325
      %p329 = scmp.eq.s32.totalorder %s38, 0
      %p330 = por %p328, %p329
      %p331 = scmp.ne.s32.totalorder %s323, %s325
      %p332 = scmp.eq.s32.totalorder %s43, 1
      %p333 = por %p331, %p332
      %p334 = scmp.ne.s32.totalorder %s325, %s326
      %p335 = scmp.eq.s32.totalorder %s43, 0
      %p336 = por %p334, %p335
      %p337 = scmp.ne.s32.totalorder %s325, %s326
      %p338 = scmp.eq.s32.totalorder %s44, 1
      %p339 = por %p337, %p338
      %p341 = scmp.ne.s32.totalorder %s326, %s340
      %p342 = scmp.eq.s32.totalorder %s44, 0
      %p343 = por %p341, %p342
      %s344 = ssub.s32 %s38, %s45
      %p345 = scmp.eq.s32.totalorder %s344, 0
      %s347 = sadd.s32 %s346, 1
      %s348 = scalar_select %p345, %s346, %s347
      %p351 = pneg %p345
      %p352 = scmp.eq.s32.totalorder %s38, 1
      %p353 = por %p351, %p352
      %p354 = scmp.ne.s32.totalorder %s346, %s349
      %p355 = scmp.eq.s32.totalorder %s38, 0
      %p356 = por %p354, %p355
      %p357 = scmp.ne.s32.totalorder %s346, %s349
      %p358 = scmp.eq.s32.totalorder %s43, 1
      %p359 = por %p357, %p358
      %p360 = scmp.ne.s32.totalorder %s349, %s350
      %p361 = scmp.eq.s32.totalorder %s43, 0
      %p362 = por %p360, %p361
      %p363 = scmp.ne.s32.totalorder %s349, %s350
      %p364 = scmp.eq.s32.totalorder %s44, 1
      %p365 = por %p363, %p364
      %p367 = scmp.ne.s32.totalorder %s350, %s366
      %p368 = scmp.eq.s32.totalorder %s44, 0
      %p369 = por %p367, %p368
      %s370 = ssub.s32 %s38, %s45
      %p371 = scmp.eq.s32.totalorder %s370, 0
      %s373 = sadd.s32 %s372, 1
      %s374 = scalar_select %p371, %s372, %s373
      %p377 = pneg %p371
      %p378 = scmp.eq.s32.totalorder %s38, 1
      %p379 = por %p377, %p378
      %p380 = scmp.ne.s32.totalorder %s372, %s375
      %p381 = scmp.eq.s32.totalorder %s38, 0
      %p382 = por %p380, %p381
      %p383 = scmp.ne.s32.totalorder %s372, %s375
      %p384 = scmp.eq.s32.totalorder %s43, 1
      %p385 = por %p383, %p384
      %p386 = scmp.ne.s32.totalorder %s375, %s376
      %p387 = scmp.eq.s32.totalorder %s43, 0
      %p388 = por %p386, %p387
      %p389 = scmp.ne.s32.totalorder %s375, %s376
      %p390 = scmp.eq.s32.totalorder %s44, 1
      %p391 = por %p389, %p390
      %p393 = scmp.ne.s32.totalorder %s376, %s392
      %p394 = scmp.eq.s32.totalorder %s44, 0
      %p395 = por %p393, %p394
      %s396 = ssub.s32 %s38, %s45
      %p397 = scmp.eq.s32.totalorder %s396, 0
      %s399 = sadd.s32 %s398, 1
      %s400 = scalar_select %p397, %s398, %s399
      %p403 = pneg %p397
      %p404 = scmp.eq.s32.totalorder %s38, 1
      %p405 = por %p403, %p404
      %p406 = scmp.ne.s32.totalorder %s398, %s401
      %p407 = scmp.eq.s32.totalorder %s38, 0
      %p408 = por %p406, %p407
      %p409 = scmp.ne.s32.totalorder %s398, %s401
      %p410 = scmp.eq.s32.totalorder %s43, 1
      %p411 = por %p409, %p410
      %p412 = scmp.ne.s32.totalorder %s401, %s402
      %p413 = scmp.eq.s32.totalorder %s43, 0
      %p414 = por %p412, %p413
      %p415 = scmp.ne.s32.totalorder %s401, %s402
      %p416 = scmp.eq.s32.totalorder %s44, 1
      %p417 = por %p415, %p416
      %p419 = scmp.ne.s32.totalorder %s402, %s418
      %p420 = scmp.eq.s32.totalorder %s44, 0
      %p421 = por %p419, %p420
      %p422 = scmp.le.s32.totalorder 1, %s38
      %p423 = scmp.lt.s32.totalorder %s38, 3
      %p424 = pnand %p422, %p423
      %p425 = pneg %p424
      // Predicated region
      $region9: #{tpu_custom_call.1} parent=5 // pred_check
        _
      $region10: #{tpu_custom_call.1} parent=5 // pred_check_branch
        %427 = sbr.rel (%p424) target = $region12
      $region11: #{tpu_custom_call.1} parent=5 // pred_region
        %s428 = ssub.s32 %s38, 1
        // Predicated region
        $region13: #{tpu_custom_call.1} parent=11 // pred_check
          %p429 = pneg %p189
        $region14: #{tpu_custom_call.1} parent=11 // pred_check_branch
          %431 = sbr.rel (%p429) target = $region16
        $region15: #{tpu_custom_call.1} parent=11 // pred_region
          _
        $region16: #{tpu_custom_call.1} parent=11 // pred_fallthru
          _
        // Predicated region
        $region17: #{tpu_custom_call.1} parent=11 // pred_check
          %p432 = pneg %p210
        $region18: #{tpu_custom_call.1} parent=11 // pred_check_branch
          %434 = sbr.rel (%p432) target = $region20
        $region19: #{tpu_custom_call.1} parent=11 // pred_region
          _
        $region20: #{tpu_custom_call.1} parent=11 // pred_fallthru
          _
        // Predicated region
        $region21: #{tpu_custom_call.1} parent=11 // pred_check
          %p435 = pneg %p231
        $region22: #{tpu_custom_call.1} parent=11 // pred_check_branch
          %437 = sbr.rel (%p435) target = $region24
        $region23: #{tpu_custom_call.1} parent=11 // pred_region
          %s439 = ssub.s32 16, 16
          %440 = vsyncadd [#allocation10], %s439
          %s442 = sshll.u32 [#allocation9], 4
          %s443 = int_to_ptr.vmem [resolvable:$true] %s442
          %445 = dma.hbm_to_vmem [thread:$0]  %s7, 16, %s443, [#allocation10]
        $region24: #{tpu_custom_call.1} parent=11 // pred_fallthru
          _
        // Predicated region
        $region25: #{tpu_custom_call.1} parent=11 // pred_check
          %p446 = pneg %p252
        $region26: #{tpu_custom_call.1} parent=11 // pred_check_branch
          %448 = sbr.rel (%p446) target = $region28
        $region27: #{tpu_custom_call.1} parent=11 // pred_region
          %s450 = ssub.s32 16, 16
          %451 = vsyncadd [#allocation10], %s450
          %s453 = sshll.u32 [#allocation11], 4
          %s454 = int_to_ptr.vmem [resolvable:$true] %s453
          %456 = dma.hbm_to_vmem [thread:$0]  %s8, 16, %s454, [#allocation10]
        $region28: #{tpu_custom_call.1} parent=11 // pred_fallthru
          _
        // Predicated region
        $region29: #{tpu_custom_call.1} parent=11 // pred_check
          %p457 = pneg %p273
        $region30: #{tpu_custom_call.1} parent=11 // pred_check_branch
          %459 = sbr.rel (%p457) target = $region32
        $region31: #{tpu_custom_call.1} parent=11 // pred_region
          %s461 = ssub.s32 16, 16
          %462 = vsyncadd [#allocation13], %s461
          %s464 = sshll.u32 [#allocation12], 4
          %s465 = int_to_ptr.vmem [resolvable:$true] %s464
          %467 = dma.hbm_to_vmem [thread:$0]  %s9, 16, %s465, [#allocation13]
        $region32: #{tpu_custom_call.1} parent=11 // pred_fallthru
          _
        // Predicated region
        $region33: #{tpu_custom_call.1} parent=11 // pred_check
          %p468 = pneg %p294
        $region34: #{tpu_custom_call.1} parent=11 // pred_check_branch
          %470 = sbr.rel (%p468) target = $region36
        $region35: #{tpu_custom_call.1} parent=11 // pred_region
          _
        $region36: #{tpu_custom_call.1} parent=11 // pred_fallthru
          _
        // Predicated region
        $region37: #{tpu_custom_call.1} parent=11 // pred_check
          %p471 = pneg %p315
        $region38: #{tpu_custom_call.1} parent=11 // pred_check_branch
          %473 = sbr.rel (%p471) target = $region40
        $region39: #{tpu_custom_call.1} parent=11 // pred_region
          _
        $region40: #{tpu_custom_call.1} parent=11 // pred_fallthru
          _
        // Predicated region
        $region41: #{tpu_custom_call.1} parent=11 // pred_check
          %p474 = pneg %p336
        $region42: #{tpu_custom_call.1} parent=11 // pred_check_branch
          %476 = sbr.rel (%p474) target = $region44
        $region43: #{tpu_custom_call.1} parent=11 // pred_region
          %s478 = ssub.s32 16, 16
          %479 = vsyncadd [#allocation13], %s478
          %s481 = sshll.u32 [#allocation14], 4
          %s482 = int_to_ptr.vmem [resolvable:$true] %s481
          %484 = dma.hbm_to_vmem [thread:$0]  %s12, 16, %s482, [#allocation13]
        $region44: #{tpu_custom_call.1} parent=11 // pred_fallthru
          _
      $region12: #{tpu_custom_call.1} parent=5 // pred_fallthru
        _
      %p485 = scmp.lt.s32.totalorder %s38, 2
      // Predicated region
      $region45: #{tpu_custom_call.1} parent=5 // pred_check
        %p486 = pneg %p485
      $region46: #{tpu_custom_call.1} parent=5 // pred_check_branch
        %488 = sbr.rel (%p486) target = $region48
      $region47: #{tpu_custom_call.1} parent=5 // pred_region
        // Predicated region
        $region49: #{tpu_custom_call.1} parent=47 // pred_check
          %p489 = pneg %p58
        $region50: #{tpu_custom_call.1} parent=47 // pred_check_branch
          %491 = sbr.rel (%p489) target = $region52
        $region51: #{tpu_custom_call.1} parent=47 // pred_region
          %p492 = scmp.lt.s32.totalorder %s38, 1
          %s493 = scalar_select %p492, %s38, 1
          %s494 = smul.addr %s493, 8
          %s495 = scalar_lea.vmem %s0, %s494
        $region52: #{tpu_custom_call.1} parent=47 // pred_fallthru
          _
        // Predicated region
        $region53: #{tpu_custom_call.1} parent=47 // pred_check
          %p496 = pneg %p84
        $region54: #{tpu_custom_call.1} parent=47 // pred_check_branch
          %498 = sbr.rel (%p496) target = $region56
        $region55: #{tpu_custom_call.1} parent=47 // pred_region
          %s499 = smul.u32 8, %s38
          %p500 = scmp.lt.s32.totalorder %s499, 15
          %s501 = scalar_select %p500, %s499, 15
          %s502 = smul.addr %s501, 2
          %s503 = smul.addr %s502, 4
          %s504 = scalar_lea.vmem %s1, %s503
          %s505 = smul.u32 8, %s38
        $region56: #{tpu_custom_call.1} parent=47 // pred_fallthru
          _
        // Predicated region
        $region57: #{tpu_custom_call.1} parent=47 // pred_check
          %p506 = pneg %p110
        $region58: #{tpu_custom_call.1} parent=47 // pred_check_branch
          %508 = sbr.rel (%p506) target = $region60
        $region59: #{tpu_custom_call.1} parent=47 // pred_region
          %s509 = sand.u32 %s100, 1
          %s510 = scalar_lea.sflag [#allocation4], %s509
          %s511 = sand.u32 %s100, 1
          %s512 = smul.addr %s511, 64
          %s513 = scalar_lea.vmem [#allocation3], %s512
          %s514 = smul.u32 8, %s38
          %s516 = ssub.s32 1024, 1024
          %517 = vsyncadd %s510, %s516
          %s518 = smul.addr %s514, 2
          %s519 = smul.addr %s518, 64
          %s520 = scalar_lea.hbm %s2, %s519
          %s521 = sshll.u32 %s513, 4
          %s522 = int_to_ptr.vmem [resolvable:$true] %s521
          %527 = dma.hbm_to_vmem [thread:$0]  %s520, 1024, %s522, %s510, 64, 64, 4
        $region60: #{tpu_custom_call.1} parent=47 // pred_fallthru
          _
        // Predicated region
        $region61: #{tpu_custom_call.1} parent=47 // pred_check
          %p528 = pneg %p136
        $region62: #{tpu_custom_call.1} parent=47 // pred_check_branch
          %530 = sbr.rel (%p528) target = $region64
        $region63: #{tpu_custom_call.1} parent=47 // pred_region
          %s531 = sand.u32 %s38, 1
          %s532 = scalar_lea.sflag [#allocation7], %s531
          %s533 = sand.u32 %s126, 1
          %s534 = smul.addr %s533, 8
          %s535 = scalar_lea.vmem [#allocation6], %s534
          %s537 = ssub.s32 128, 128
          %538 = vsyncadd %s532, %s537
          %s539 = smul.addr %s38, 128
          %s540 = scalar_lea.hbm %s3, %s539
          %s542 = sshll.u32 %s535, 4
          %s543 = int_to_ptr.vmem [resolvable:$true] %s542
          %545 = dma.hbm_to_vmem [thread:$0]  %s540, 128, %s543, %s532
        $region64: #{tpu_custom_call.1} parent=47 // pred_fallthru
          _
        // Predicated region
        $region65: #{tpu_custom_call.1} parent=47 // pred_check
          %p546 = pneg %p162
        $region66: #{tpu_custom_call.1} parent=47 // pred_check_branch
          %548 = sbr.rel (%p546) target = $region68
        $region67: #{tpu_custom_call.1} parent=47 // pred_region
          %s549 = sand.u32 %s38, 1
          %s550 = scalar_lea.sflag [#allocation7], %s549
          %s551 = sand.u32 %s152, 1
          %s552 = smul.addr %s551, 8
          %s553 = scalar_lea.vmem [#allocation8], %s552
          %s555 = ssub.s32 128, 128
          %556 = vsyncadd %s550, %s555
          %s557 = smul.addr %s38, 128
          %s558 = scalar_lea.hbm %s4, %s557
          %s560 = sshll.u32 %s553, 4
          %s561 = int_to_ptr.vmem [resolvable:$true] %s560
          %563 = dma.hbm_to_vmem [thread:$0]  %s558, 128, %s561, %s550
        $region68: #{tpu_custom_call.1} parent=47 // pred_fallthru
          _
      $region48: #{tpu_custom_call.1} parent=5 // pred_fallthru
        _
      %p564 = scmp.le.s32.totalorder 1, %s38
      %p565 = scmp.lt.s32.totalorder %s38, 3
      %p566 = pnand %p564, %p565
      %p567 = pneg %p566
      // Predicated region
      $region69: #{tpu_custom_call.1} parent=5 // pred_check
        _
      $region70: #{tpu_custom_call.1} parent=5 // pred_check_branch
        %569 = sbr.rel (%p566) target = $region72
      $region71: #{tpu_custom_call.1} parent=5 // pred_region
        %s570 = ssub.s32 %s38, 1
        %s571 = sand.u32 %s103, 1
        %s572 = scalar_lea.sflag [#allocation4], %s571
        %s573 = sand.u32 %s103, 1
        %s574 = smul.addr %s573, 64
        %s575 = scalar_lea.vmem [#allocation3], %s574
        // Predicated region
        $region73: #{tpu_custom_call.1} parent=71 // pred_check
          %p576 = pneg %p116
        $region74: #{tpu_custom_call.1} parent=71 // pred_check_branch
          %578 = sbr.rel (%p576) target = $region76
        $region75: #{tpu_custom_call.1} parent=71 // pred_region
          %579 = dma.done %s572, 1024
        $region76: #{tpu_custom_call.1} parent=71 // pred_fallthru
          _
        %s580 = sand.u32 %s43, 1
        %s581 = scalar_lea.sflag [#allocation7], %s580
        %s582 = sand.u32 %s129, 1
        %s583 = smul.addr %s582, 8
        %s584 = scalar_lea.vmem [#allocation6], %s583
        // Predicated region
        $region77: #{tpu_custom_call.1} parent=71 // pred_check
          %p585 = pneg %p142
        $region78: #{tpu_custom_call.1} parent=71 // pred_check_branch
          %587 = sbr.rel (%p585) target = $region80
        $region79: #{tpu_custom_call.1} parent=71 // pred_region
          %588 = dma.done %s581, 128
        $region80: #{tpu_custom_call.1} parent=71 // pred_fallthru
          _
        %s589 = sand.u32 %s43, 1
        %s590 = scalar_lea.sflag [#allocation7], %s589
        %s591 = sand.u32 %s155, 1
        %s592 = smul.addr %s591, 8
        %s593 = scalar_lea.vmem [#allocation8], %s592
        // Predicated region
        $region81: #{tpu_custom_call.1} parent=71 // pred_check
          %p594 = pneg %p168
        $region82: #{tpu_custom_call.1} parent=71 // pred_check_branch
          %596 = sbr.rel (%p594) target = $region84
        $region83: #{tpu_custom_call.1} parent=71 // pred_region
          %597 = dma.done %s590, 128
        $region84: #{tpu_custom_call.1} parent=71 // pred_fallthru
          _
        // Predicated region
        $region85: #{tpu_custom_call.1} parent=71 // pred_check
          %p598 = pneg %p231
        $region86: #{tpu_custom_call.1} parent=71 // pred_check_branch
          %600 = sbr.rel (%p598) target = $region88
        $region87: #{tpu_custom_call.1} parent=71 // pred_region
          %601 = dma.done [#allocation10], 16
        $region88: #{tpu_custom_call.1} parent=71 // pred_fallthru
          _
        // Predicated region
        $region89: #{tpu_custom_call.1} parent=71 // pred_check
          %p602 = pneg %p252
        $region90: #{tpu_custom_call.1} parent=71 // pred_check_branch
          %604 = sbr.rel (%p602) target = $region92
        $region91: #{tpu_custom_call.1} parent=71 // pred_region
          %605 = dma.done [#allocation10], 16
        $region92: #{tpu_custom_call.1} parent=71 // pred_fallthru
          _
        // Predicated region
        $region93: #{tpu_custom_call.1} parent=71 // pred_check
          %p606 = pneg %p273
        $region94: #{tpu_custom_call.1} parent=71 // pred_check_branch
          %608 = sbr.rel (%p606) target = $region96
        $region95: #{tpu_custom_call.1} parent=71 // pred_region
          %609 = dma.done [#allocation13], 16
        $region96: #{tpu_custom_call.1} parent=71 // pred_fallthru
          _
        // Predicated region
        $region97: #{tpu_custom_call.1} parent=71 // pred_check
          %p610 = pneg %p336
        $region98: #{tpu_custom_call.1} parent=71 // pred_check_branch
          %612 = sbr.rel (%p610) target = $region100
        $region99: #{tpu_custom_call.1} parent=71 // pred_region
          %613 = dma.done [#allocation13], 16
        $region100: #{tpu_custom_call.1} parent=71 // pred_fallthru
          _
        %p614 = scmp.lt.s32.totalorder %s43, 1
        %s615 = scalar_select %p614, %s43, 1
        %s616 = smul.addr %s615, 8
        %s617 = scalar_lea.vmem %s0, %s616
        %p618 = pneg %p64
        %p619 = pneg %p61
        %s620 = smul.u32 8, %s43
        %p621 = scmp.lt.s32.totalorder %s620, 15
        %s622 = scalar_select %p621, %s620, 15
        %s623 = smul.addr %s622, 2
        %s624 = smul.addr %s623, 4
        %s625 = scalar_lea.vmem %s1, %s624
        %p626 = pneg %p90
        %p627 = pneg %p87
        %s628 = sand.u32 %s103, 1
        %s629 = scalar_lea.sflag [#allocation4], %s628
        %s630 = sand.u32 %s103, 1
        %s631 = smul.addr %s630, 64
        %s632 = scalar_lea.vmem [#allocation3], %s631
        %p633 = pneg %p116
        %p634 = pneg %p113
        %s635 = sand.u32 %s43, 1
        %s636 = scalar_lea.sflag [#allocation7], %s635
        %s637 = sand.u32 %s129, 1
        %s638 = smul.addr %s637, 8
        %s639 = scalar_lea.vmem [#allocation6], %s638
        %p640 = pneg %p142
        %p641 = pneg %p139
        %s642 = sand.u32 %s43, 1
        %s643 = scalar_lea.sflag [#allocation7], %s642
        %s644 = sand.u32 %s155, 1
        %s645 = smul.addr %s644, 8
        %s646 = scalar_lea.vmem [#allocation8], %s645
        %p647 = pneg %p168
        %p648 = pneg %p165
        %p649 = pneg %p189
        %p650 = pneg %p186
        %p651 = pneg %p210
        %p652 = pneg %p207
        %p653 = pneg %p231
        %p654 = pneg %p228
        %p655 = pneg %p252
        %p656 = pneg %p249
        %p657 = pneg %p273
        %p658 = pneg %p270
        %p659 = pneg %p294
        %p660 = pneg %p291
        %p661 = pneg %p315
        %p662 = pneg %p312
        %p663 = pneg %p336
        %p664 = pneg %p333
        %p665 = pneg %p362
        %p666 = pneg %p359
        %s667 = sand.u32 %s349, 1
        %s668 = scalar_lea.sflag [#allocation5], %s667
        %s669 = sand.u32 %s349, 1
        %s670 = smul.addr %s669, 8
        %s671 = scalar_lea.vmem [#allocation15], %s670
        %p672 = pneg %p388
        %p673 = pneg %p385
        %s674 = sand.u32 %s43, 1
        %s675 = scalar_lea.sflag [#allocation17], %s674
        %s676 = sand.u32 %s375, 1
        %s677 = smul.addr %s676, 8
        %s678 = scalar_lea.vmem [#allocation16], %s677
        %p679 = pneg %p414
        %p680 = pneg %p411
        %s681 = sand.u32 %s43, 1
        %s682 = scalar_lea.sflag [#allocation17], %s681
        %s683 = sand.u32 %s401, 1
        %s684 = smul.addr %s683, 8
        %s685 = scalar_lea.vmem [#allocation18], %s684
        %p686 = scmp.lt.s32.totalorder %s43, 1
        %s687 = scalar_select %p686, %s43, 1
        %s688 = smul.addr %s687, 8
        %s689 = scalar_lea.vmem %s0, %s688
        %s690 = smul.u32 8, %s43
        %p691 = scmp.lt.s32.totalorder %s690, 15
        %s692 = scalar_select %p691, %s690, 15
        %s693 = smul.addr %s692, 2
        %s694 = smul.addr %s693, 4
        %s695 = scalar_lea.vmem %s1, %s694
        %s696 = smul.u32 8, %s43
        %s697 = smul.u32 8, %s43
        %v699 = vld [vmem:[%s689] sm:$0xff]
        %v700 = vld [vmem:[%s584] sm:$0xff]
        %v701 = vld [vmem:[%s593] sm:$0xff]
        %v702 = vld [vmem:[%s5] sm:$0xff]
        %v703 = vld [vmem:[%s5 + $0x8] sm:$0xff]
        %v704 = vld [vmem:[%s5 + $0x10] sm:$0xff]
        %v705 = vld [vmem:[%s5 + $0x18] sm:$0xff]
        %v706 = vld [vmem:[%s6] sm:$0x1]
        %v708 = vlaneseq
        %v709 = vshrl.u32 %v708, 7
        %v710 = vsub.s32 0, %v709
        %v711 = vrot.slane %v706, %v710
        %vm713 = vcmask 261120
        %v715 = vsel %vm713, %v699, 0
        %717 = vmatprep.subr.mxu0 0.0
        %718 = vmatpush1.msra.mxu0 %v702
        %719 = vmatprep.subr.mxu0 0.0
        %720 = vmatpush1.msra.mxu0 %v703
        %721 = vmatprep.subr.mxu0 0.0
        %722 = vmatpush1.msra.mxu0 %v704
        %723 = vmatprep.subr.mxu0 0.0
        %724 = vmatpush1.msra.mxu0 %v705
        %725 = vmatprep.subr.mxu0 0.0
        %726 = vmatpush1.msra.mxu0 0.0
        %727 = vmatprep.subr.mxu0 0.0
        %728 = vmatpush1.msra.mxu0 0.0
        %729 = vmatprep.subr.mxu0 0.0
        %730 = vmatpush1.msra.mxu0 0.0
        %731 = vmatprep.subr.mxu0 0.0
        %732 = vmatpush1.msra.mxu0 0.0
        %733 = vmatprep.subr.mxu0 0.0
        %734 = vmatpush1.msra.mxu0 0.0
        %735 = vmatprep.subr.mxu0 0.0
        %736 = vmatpush1.msra.mxu0 0.0
        %737 = vmatprep.subr.mxu0 0.0
        %738 = vmatpush1.msra.mxu0 0.0
        %739 = vmatprep.subr.mxu0 0.0
        %740 = vmatpush1.msra.mxu0 0.0
        %741 = vmatprep.subr.mxu0 0.0
        %742 = vmatpush1.msra.mxu0 0.0
        %743 = vmatprep.subr.mxu0 0.0
        %744 = vmatpush1.msra.mxu0 0.0
        %745 = vmatprep.subr.mxu0 0.0
        %746 = vmatpush1.msra.mxu0 0.0
        %747 = vmatprep.subr.mxu0 0.0
        %748 = vmatpush1.msra.mxu0 0.0
        %749 = vmatprep.subr.mxu0 0.0
        %750 = vmatpush1.msra.mxu0 0.0
        %751 = vmatprep.subr.mxu0 0.0
        %752 = vmatpush1.msra.mxu0 0.0
        %753 = vmatprep.subr.mxu0 0.0
        %754 = vmatpush1.msra.mxu0 0.0
        %755 = vmatprep.subr.mxu0 0.0
        %756 = vmatpush1.msra.mxu0 0.0
        %757 = vmatprep.subr.mxu0 0.0
        %758 = vmatpush1.msra.mxu0 0.0
        %759 = vmatprep.subr.mxu0 0.0
        %760 = vmatpush1.msra.mxu0 0.0
        %761 = vmatprep.subr.mxu0 0.0
        %762 = vmatpush1.msra.mxu0 0.0
        %763 = vmatprep.subr.mxu0 0.0
        %764 = vmatpush1.msra.mxu0 0.0
        %765 = vmatprep.subr.mxu0 0.0
        %766 = vmatpush1.msra.mxu0 0.0
        %767 = vmatprep.subr.mxu0 0.0
        %768 = vmatpush1.msra.mxu0 0.0
        %769 = vmatprep.subr.mxu0 0.0
        %770 = vmatpush1.msra.mxu0 0.0
        %771 = vmatprep.subr.mxu0 0.0
        %772 = vmatpush1.msra.mxu0 0.0
        %773 = vmatprep.subr.mxu0 0.0
        %774 = vmatpush1.msra.mxu0 0.0
        %775 = vmatprep.subr.mxu0 0.0
        %776 = vmatpush1.msra.mxu0 0.0
        %777 = vmatprep.subr.mxu0 0.0
        %778 = vmatpush1.msra.mxu0 0.0
        %779 = vmatprep.subr.mxu0 0.0
        %780 = vmatpush1.msra.mxu0 0.0
        %781 = vmatprep.mubr.f32.mxu0 0.0
        %782 = vmatmul.mubr.f32.gmra.mrb[0].mxu0 %v715
        %v783 = vpop.f32.mrb[0].mxu0
        %v784 = vadd.f32 %v711, %v783
        %v785 = vpop.f32.mrb[0].mxu0
        %786 = vdwg.mxu0
        %v787 = vld [vmem:[#allocation11] sm:$0x1]
        %v789 = vlaneseq
        %v790 = vshrl.u32 %v789, 7
        %v791 = vsub.s32 0, %v790
        %v792 = vrot.slane %v787, %v791
        %v794 = vadd.f32 %v784, %v792
        %v795 = vld [vmem:[%s575] sm:$0xf]
        %v796 = vld [vmem:[%s575 + $0x4] sm:$0xf]
        %v797 = vld [vmem:[%s575 + $0x8] sm:$0xf]
        %v798 = vld [vmem:[%s575 + $0xc] sm:$0xf]
        %v799 = vld [vmem:[%s575 + $0x10] sm:$0xf]
        %v800 = vld [vmem:[%s575 + $0x14] sm:$0xf]
        %v801 = vld [vmem:[%s575 + $0x18] sm:$0xf]
        %v802 = vld [vmem:[%s575 + $0x1c] sm:$0xf]
        %v803 = vld [vmem:[%s575 + $0x20] sm:$0xf]
        %v804 = vld [vmem:[%s575 + $0x24] sm:$0xf]
        %v805 = vld [vmem:[%s575 + $0x28] sm:$0xf]
        %v806 = vld [vmem:[%s575 + $0x2c] sm:$0xf]
        %v807 = vld [vmem:[%s575 + $0x30] sm:$0xf]
        %v808 = vld [vmem:[%s575 + $0x34] sm:$0xf]
        %v809 = vld [vmem:[%s575 + $0x38] sm:$0xf]
        %v810 = vld [vmem:[%s575 + $0x3c] sm:$0xf]
        %v811 = vunpack.c.l.bf16 %v795
        %v812 = vunpack.c.l.bf16 %v796
        %v813 = vunpack.c.l.bf16 %v797
        %v814 = vunpack.c.l.bf16 %v798
        %v815 = vunpack.c.l.bf16 %v799
        %v816 = vunpack.c.l.bf16 %v800
        %v817 = vunpack.c.l.bf16 %v801
        %v818 = vunpack.c.l.bf16 %v802
        %v819 = vunpack.c.l.bf16 %v803
        %v820 = vunpack.c.l.bf16 %v804
        %v821 = vunpack.c.l.bf16 %v805
        %v822 = vunpack.c.l.bf16 %v806
        %v823 = vunpack.c.l.bf16 %v807
        %v824 = vunpack.c.l.bf16 %v808
        %v825 = vunpack.c.l.bf16 %v809
        %v826 = vunpack.c.l.bf16 %v810
        %v828 = vcombine.high %v794, %v794
        %v830 = vunpack.c.l.s4 1966171168
        %v831 = vunpack.c.0.s8 %v830
        %v832 = vlaneseq
        %v833 = vshrl.u32 %v832, 7
        %v834 = vsub.s32 %v831, %v833
        %v835 = vrot.slane %v794, %v834
        %v837 = vunpack.c.l.s4 1966171168
        %v838 = vunpack.c.0.s8 %v837
        %v839 = vlaneseq
        %v840 = vshrl.u32 %v839, 7
        %v841 = vsub.s32 %v838, %v840
        %v842 = vrot.slane %v828, %v841
        %v843 = vcombine.high %v835, %v835
        %v844 = vcombine.high %v842, %v842
        %v846 = vunpack.c.l.s4 1966171168
        %v847 = vunpack.c.0.s8 %v846
        %v848 = vlaneseq
        %v849 = vshrl.u32 %v848, 7
        %v850 = vsub.s32 %v847, %v849
        %v851 = vrot.slane %v835, %v850
        %v853 = vunpack.c.l.s4 1966171168
        %v854 = vunpack.c.0.s8 %v853
        %v855 = vlaneseq
        %v856 = vshrl.u32 %v855, 7
        %v857 = vsub.s32 %v854, %v856
        %v858 = vrot.slane %v842, %v857
        %v860 = vunpack.c.l.s4 1966171168
        %v861 = vunpack.c.0.s8 %v860
        %v862 = vlaneseq
        %v863 = vshrl.u32 %v862, 7
        %v864 = vsub.s32 %v861, %v863
        %v865 = vrot.slane %v843, %v864
        %v867 = vunpack.c.l.s4 1966171168
        %v868 = vunpack.c.0.s8 %v867
        %v869 = vlaneseq
        %v870 = vshrl.u32 %v869, 7
        %v871 = vsub.s32 %v868, %v870
        %v872 = vrot.slane %v844, %v871
        %v873 = vcombine.high %v851, %v851
        %v874 = vcombine.high %v858, %v858
        %v875 = vcombine.high %v865, %v865
        %v876 = vcombine.high %v872, %v872
        %v877 = vlaneseq
        %v878 = vshrl.u32 %v877, 7
        %v879 = vsub.s32 0, %v878
        %v880 = vrot.slane %v851, %v879
        %v881 = vlaneseq
        %v882 = vshrl.u32 %v881, 7
        %v883 = vsub.s32 0, %v882
        %v884 = vrot.slane %v865, %v883
        %v885 = vlaneseq
        %v886 = vshrl.u32 %v885, 7
        %v887 = vsub.s32 0, %v886
        %v888 = vrot.slane %v873, %v887
        %v889 = vlaneseq
        %v890 = vshrl.u32 %v889, 7
        %v891 = vsub.s32 0, %v890
        %v892 = vrot.slane %v875, %v891
        %v893 = vlaneseq
        %v894 = vshrl.u32 %v893, 7
        %v895 = vsub.s32 0, %v894
        %v896 = vrot.slane %v858, %v895
        %v897 = vlaneseq
        %v898 = vshrl.u32 %v897, 7
        %v899 = vsub.s32 0, %v898
        %v900 = vrot.slane %v872, %v899
        %v901 = vlaneseq
        %v902 = vshrl.u32 %v901, 7
        %v903 = vsub.s32 0, %v902
        %v904 = vrot.slane %v874, %v903
        %v905 = vlaneseq
        %v906 = vshrl.u32 %v905, 7
        %v907 = vsub.s32 0, %v906
        %v908 = vrot.slane %v876, %v907
        %v917 = vadd.f32 %v811, %v880
        %v918 = vadd.f32 %v812, %v880
        %v919 = vadd.f32 %v813, %v884
        %v920 = vadd.f32 %v814, %v884
        %v921 = vadd.f32 %v815, %v888
        %v922 = vadd.f32 %v816, %v888
        %v923 = vadd.f32 %v817, %v892
        %v924 = vadd.f32 %v818, %v892
        %v925 = vadd.f32 %v819, %v896
        %v926 = vadd.f32 %v820, %v896
        %v927 = vadd.f32 %v821, %v900
        %v928 = vadd.f32 %v822, %v900
        %v929 = vadd.f32 %v823, %v904
        %v930 = vadd.f32 %v824, %v904
        %v931 = vadd.f32 %v825, %v908
        %v932 = vadd.f32 %v826, %v908
        %v933 = vlaneseq
        %v934 = vshrl.u32 %v933, 7
        %v935 = vsub.s32 0, %v934
        %v936 = vrot.slane %v700, %v935
        %938 = vbcast.lane.b32.xlu0 %v936, 256
        %v939 = vpop.permute.xlu0 %938
        %s941 = sor.u32 256, 8
        %942 = vbcast.lane.b32.xlu0 %v936, %s941
        %v943 = vpop.permute.xlu0 %942
        %v944 = vlaneseq
        %v945 = vshrl.u32 %v944, 7
        %v946 = vsub.s32 1, %v945
        %v947 = vrot.slane %v700, %v946
        %949 = vbcast.lane.b32.xlu0 %v947, 256
        %v950 = vpop.permute.xlu0 %949
        %s952 = sor.u32 256, 8
        %953 = vbcast.lane.b32.xlu0 %v947, %s952
        %v954 = vpop.permute.xlu0 %953
        %v955 = vlaneseq
        %v956 = vshrl.u32 %v955, 7
        %v957 = vsub.s32 2, %v956
        %v958 = vrot.slane %v700, %v957
        %960 = vbcast.lane.b32.xlu0 %v958, 256
        %v961 = vpop.permute.xlu0 %960
        %s963 = sor.u32 256, 8
        %964 = vbcast.lane.b32.xlu0 %v958, %s963
        %v965 = vpop.permute.xlu0 %964
        %v966 = vlaneseq
        %v967 = vshrl.u32 %v966, 7
        %v968 = vsub.s32 3, %v967
        %v969 = vrot.slane %v700, %v968
        %971 = vbcast.lane.b32.xlu0 %v969, 256
        %v972 = vpop.permute.xlu0 %971
        %s974 = sor.u32 256, 8
        %975 = vbcast.lane.b32.xlu0 %v969, %s974
        %v976 = vpop.permute.xlu0 %975
        %v977 = vlaneseq
        %v978 = vshrl.u32 %v977, 7
        %v979 = vsub.s32 4, %v978
        %v980 = vrot.slane %v700, %v979
        %982 = vbcast.lane.b32.xlu0 %v980, 256
        %v983 = vpop.permute.xlu0 %982
        %s985 = sor.u32 256, 8
        %986 = vbcast.lane.b32.xlu0 %v980, %s985
        %v987 = vpop.permute.xlu0 %986
        %v988 = vlaneseq
        %v989 = vshrl.u32 %v988, 7
        %v990 = vsub.s32 5, %v989
        %v991 = vrot.slane %v700, %v990
        %993 = vbcast.lane.b32.xlu0 %v991, 256
        %v994 = vpop.permute.xlu0 %993
        %s996 = sor.u32 256, 8
        %997 = vbcast.lane.b32.xlu0 %v991, %s996
        %v998 = vpop.permute.xlu0 %997
        %v999 = vlaneseq
        %v1000 = vshrl.u32 %v999, 7
        %v1001 = vsub.s32 6, %v1000
        %v1002 = vrot.slane %v700, %v1001
        %1004 = vbcast.lane.b32.xlu0 %v1002, 256
        %v1005 = vpop.permute.xlu0 %1004
        %s1007 = sor.u32 256, 8
        %1008 = vbcast.lane.b32.xlu0 %v1002, %s1007
        %v1009 = vpop.permute.xlu0 %1008
        %v1010 = vlaneseq
        %v1011 = vshrl.u32 %v1010, 7
        %v1012 = vsub.s32 7, %v1011
        %v1013 = vrot.slane %v700, %v1012
        %1015 = vbcast.lane.b32.xlu0 %v1013, 256
        %v1016 = vpop.permute.xlu0 %1015
        %s1018 = sor.u32 256, 8
        %1019 = vbcast.lane.b32.xlu0 %v1013, %s1018
        %v1020 = vpop.permute.xlu0 %1019
        %v1021 = vld [vmem:[#allocation9] sm:$0x1]
        %v1023 = vlaneseq
        %v1024 = vshrl.u32 %v1023, 7
        %v1025 = vsub.s32 0, %v1024
        %v1026 = vrot.slane %v1021, %v1025
        %v1028 = vmul.f32 %v939, %v1026
        %v1029 = vmul.f32 %v943, %v1026
        %v1030 = vmul.f32 %v950, %v1026
        %v1031 = vmul.f32 %v954, %v1026
        %v1032 = vmul.f32 %v961, %v1026
        %v1033 = vmul.f32 %v965, %v1026
        %v1034 = vmul.f32 %v972, %v1026
        %v1035 = vmul.f32 %v976, %v1026
        %v1036 = vmul.f32 %v983, %v1026
        %v1037 = vmul.f32 %v987, %v1026
        %v1038 = vmul.f32 %v994, %v1026
        %v1039 = vmul.f32 %v998, %v1026
        %v1040 = vmul.f32 %v1005, %v1026
        %v1041 = vmul.f32 %v1009, %v1026
        %v1042 = vmul.f32 %v1016, %v1026
        %v1043 = vmul.f32 %v1020, %v1026
        %v1044 = vadd.f32 %v917, %v1028
        %v1045 = vadd.f32 %v918, %v1029
        %v1046 = vadd.f32 %v919, %v1030
        %v1047 = vadd.f32 %v920, %v1031
        %v1048 = vadd.f32 %v921, %v1032
        %v1049 = vadd.f32 %v922, %v1033
        %v1050 = vadd.f32 %v923, %v1034
        %v1051 = vadd.f32 %v924, %v1035
        %v1052 = vadd.f32 %v925, %v1036
        %v1053 = vadd.f32 %v926, %v1037
        %v1054 = vadd.f32 %v927, %v1038
        %v1055 = vadd.f32 %v928, %v1039
        %v1056 = vadd.f32 %v929, %v1040
        %v1057 = vadd.f32 %v930, %v1041
        %v1058 = vadd.f32 %v931, %v1042
        %v1059 = vadd.f32 %v932, %v1043
        %v1060 = vtanh.pop %v1044
        %v1061 = vtanh.pop %v1045
        %v1062 = vtanh.pop %v1046
        %v1063 = vtanh.pop %v1047
        %v1064 = vtanh.pop %v1048
        %v1065 = vtanh.pop %v1049
        %v1066 = vtanh.pop %v1050
        %v1067 = vtanh.pop %v1051
        %v1068 = vtanh.pop %v1052
        %v1069 = vtanh.pop %v1053
        %v1070 = vtanh.pop %v1054
        %v1071 = vtanh.pop %v1055
        %v1072 = vtanh.pop %v1056
        %v1073 = vtanh.pop %v1057
        %v1074 = vtanh.pop %v1058
        %v1075 = vtanh.pop %v1059
        %v1076 = vld [vmem:[#allocation12] sm:$0x1]
        %v1078 = vlaneseq
        %v1079 = vshrl.u32 %v1078, 7
        %v1080 = vsub.s32 0, %v1079
        %v1081 = vrot.slane %v1076, %v1080
        %v1083 = vmul.f32 %v1060, %v1081
        %v1084 = vmul.f32 %v1061, %v1081
        %v1085 = vmul.f32 %v1062, %v1081
        %v1086 = vmul.f32 %v1063, %v1081
        %v1087 = vmul.f32 %v1064, %v1081
        %v1088 = vmul.f32 %v1065, %v1081
        %v1089 = vmul.f32 %v1066, %v1081
        %v1090 = vmul.f32 %v1067, %v1081
        %v1091 = vmul.f32 %v1068, %v1081
        %v1092 = vmul.f32 %v1069, %v1081
        %v1093 = vmul.f32 %v1070, %v1081
        %v1094 = vmul.f32 %v1071, %v1081
        %v1095 = vmul.f32 %v1072, %v1081
        %v1096 = vmul.f32 %v1073, %v1081
        %v1097 = vmul.f32 %v1074, %v1081
        %v1098 = vmul.f32 %v1075, %v1081
        %v1099 = vsel %vm713, %v1083, 0.0
        %1100 = vadd.xlane.f32.xlu0 %v1099
        %v1101 = vpop.xlane.xlu0 %1100
        %v1102 = vsel %vm713, %v1084, 0.0
        %1103 = vadd.xlane.f32.xlu0 %v1102
        %v1104 = vpop.xlane.xlu0 %1103
        %v1105 = vsel %vm713, %v1085, 0.0
        %1106 = vadd.xlane.f32.xlu0 %v1105
        %v1107 = vpop.xlane.xlu0 %1106
        %v1108 = vsel %vm713, %v1086, 0.0
        %1109 = vadd.xlane.f32.xlu0 %v1108
        %v1110 = vpop.xlane.xlu0 %1109
        %v1111 = vsel %vm713, %v1087, 0.0
        %1112 = vadd.xlane.f32.xlu0 %v1111
        %v1113 = vpop.xlane.xlu0 %1112
        %v1114 = vsel %vm713, %v1088, 0.0
        %1115 = vadd.xlane.f32.xlu0 %v1114
        %v1116 = vpop.xlane.xlu0 %1115
        %v1117 = vsel %vm713, %v1089, 0.0
        %1118 = vadd.xlane.f32.xlu0 %v1117
        %v1119 = vpop.xlane.xlu0 %1118
        %v1120 = vsel %vm713, %v1090, 0.0
        %1121 = vadd.xlane.f32.xlu0 %v1120
        %v1122 = vpop.xlane.xlu0 %1121
        %v1123 = vsel %vm713, %v1091, 0.0
        %1124 = vadd.xlane.f32.xlu0 %v1123
        %v1125 = vpop.xlane.xlu0 %1124
        %v1126 = vsel %vm713, %v1092, 0.0
        %1127 = vadd.xlane.f32.xlu0 %v1126
        %v1128 = vpop.xlane.xlu0 %1127
        %v1129 = vsel %vm713, %v1093, 0.0
        %1130 = vadd.xlane.f32.xlu0 %v1129
        %v1131 = vpop.xlane.xlu0 %1130
        %v1132 = vsel %vm713, %v1094, 0.0
        %1133 = vadd.xlane.f32.xlu0 %v1132
        %v1134 = vpop.xlane.xlu0 %1133
        %v1135 = vsel %vm713, %v1095, 0.0
        %1136 = vadd.xlane.f32.xlu0 %v1135
        %v1137 = vpop.xlane.xlu0 %1136
        %v1138 = vsel %vm713, %v1096, 0.0
        %1139 = vadd.xlane.f32.xlu0 %v1138
        %v1140 = vpop.xlane.xlu0 %1139
        %v1141 = vsel %vm713, %v1097, 0.0
        %1142 = vadd.xlane.f32.xlu0 %v1141
        %v1143 = vpop.xlane.xlu0 %1142
        %v1144 = vsel %vm713, %v1098, 0.0
        %1145 = vadd.xlane.f32.xlu0 %v1144
        %v1146 = vpop.xlane.xlu0 %1145
        %v1147 = vld [vmem:[#allocation2] sm:$0x1]
        %v1149 = vlaneseq
        %v1150 = vshrl.u32 %v1149, 7
        %v1151 = vsub.s32 0, %v1150
        %v1152 = vrot.slane %v1147, %v1151
        %1153 = vset.pattern.permute.xlu0 0
        %1154 = vperm.xlu0 %1153, %v1152
        %v1155 = vpop.permute.xlu0 %1154
        %v1157 = vadd.f32 %v1101, %v1155
        %v1158 = vadd.f32 %v1104, %v1155
        %v1159 = vadd.f32 %v1107, %v1155
        %v1160 = vadd.f32 %v1110, %v1155
        %v1161 = vadd.f32 %v1113, %v1155
        %v1162 = vadd.f32 %v1116, %v1155
        %v1163 = vadd.f32 %v1119, %v1155
        %v1164 = vadd.f32 %v1122, %v1155
        %v1165 = vadd.f32 %v1125, %v1155
        %v1166 = vadd.f32 %v1128, %v1155
        %v1167 = vadd.f32 %v1131, %v1155
        %v1168 = vadd.f32 %v1134, %v1155
        %v1169 = vadd.f32 %v1137, %v1155
        %v1170 = vadd.f32 %v1140, %v1155
        %v1171 = vadd.f32 %v1143, %v1155
        %v1172 = vadd.f32 %v1146, %v1155
        %v1189 = vlaneseq
        %v1190 = vand.u32 %v1189, 127
        %v1191 = vlaneseq
        %v1192 = vshrl.u32 %v1191, 7
        %v1193 = vsub.s32 %v1190, %v1192
        %v1194 = vrot.slane %v1157, %v1193
        %v1195 = vadd.s32 %v1190, 4294967288
        %v1196 = vlaneseq
        %v1197 = vshrl.u32 %v1196, 7
        %v1198 = vsub.s32 %v1195, %v1197
        %v1199 = vrot.slane %v1158, %v1198
        %vm1200 = vcmask 130112
        %v1201 = vsel %vm1200, %v1199, %v1194
        %v1202 = vlaneseq
        %v1203 = vshrl.u32 %v1202, 7
        %v1204 = vsub.s32 %v1190, %v1203
        %v1205 = vrot.slane %v1159, %v1204
        %v1206 = vlaneseq
        %v1207 = vshrl.u32 %v1206, 7
        %v1208 = vsub.s32 %v1195, %v1207
        %v1209 = vrot.slane %v1160, %v1208
        %v1210 = vsel %vm1200, %v1209, %v1205
        %v1211 = vlaneseq
        %v1212 = vshrl.u32 %v1211, 7
        %v1213 = vsub.s32 %v1190, %v1212
        %v1214 = vrot.slane %v1161, %v1213
        %v1215 = vlaneseq
        %v1216 = vshrl.u32 %v1215, 7
        %v1217 = vsub.s32 %v1195, %v1216
        %v1218 = vrot.slane %v1162, %v1217
        %v1219 = vsel %vm1200, %v1218, %v1214
        %v1220 = vlaneseq
        %v1221 = vshrl.u32 %v1220, 7
        %v1222 = vsub.s32 %v1190, %v1221
        %v1223 = vrot.slane %v1163, %v1222
        %v1224 = vlaneseq
        %v1225 = vshrl.u32 %v1224, 7
        %v1226 = vsub.s32 %v1195, %v1225
        %v1227 = vrot.slane %v1164, %v1226
        %v1228 = vsel %vm1200, %v1227, %v1223
        %v1229 = vlaneseq
        %v1230 = vshrl.u32 %v1229, 7
        %v1231 = vsub.s32 %v1190, %v1230
        %v1232 = vrot.slane %v1165, %v1231
        %v1233 = vlaneseq
        %v1234 = vshrl.u32 %v1233, 7
        %v1235 = vsub.s32 %v1195, %v1234
        %v1236 = vrot.slane %v1166, %v1235
        %v1237 = vsel %vm1200, %v1236, %v1232
        %v1238 = vlaneseq
        %v1239 = vshrl.u32 %v1238, 7
        %v1240 = vsub.s32 %v1190, %v1239
        %v1241 = vrot.slane %v1167, %v1240
        %v1242 = vlaneseq
        %v1243 = vshrl.u32 %v1242, 7
        %v1244 = vsub.s32 %v1195, %v1243
        %v1245 = vrot.slane %v1168, %v1244
        %v1246 = vsel %vm1200, %v1245, %v1241
        %v1247 = vlaneseq
        %v1248 = vshrl.u32 %v1247, 7
        %v1249 = vsub.s32 %v1190, %v1248
        %v1250 = vrot.slane %v1169, %v1249
        %v1251 = vlaneseq
        %v1252 = vshrl.u32 %v1251, 7
        %v1253 = vsub.s32 %v1195, %v1252
        %v1254 = vrot.slane %v1170, %v1253
        %v1255 = vsel %vm1200, %v1254, %v1250
        %v1256 = vlaneseq
        %v1257 = vshrl.u32 %v1256, 7
        %v1258 = vsub.s32 %v1190, %v1257
        %v1259 = vrot.slane %v1171, %v1258
        %v1260 = vlaneseq
        %v1261 = vshrl.u32 %v1260, 7
        %v1262 = vsub.s32 %v1195, %v1261
        %v1263 = vrot.slane %v1172, %v1262
        %v1264 = vsel %vm1200, %v1263, %v1259
        %vm1265 = vcmask 1041409
        %v1266 = vsel %vm1265, %v1210, %v1201
        %vm1267 = vcmask 1042434
        %v1268 = vsel %vm1267, %v1219, %v1266
        %vm1269 = vcmask 1043459
        %v1270 = vsel %vm1269, %v1228, %v1268
        %vm1271 = vcmask 1044484
        %v1272 = vsel %vm1271, %v1237, %v1270
        %vm1273 = vcmask 1045509
        %v1274 = vsel %vm1273, %v1246, %v1272
        %vm1275 = vcmask 1046534
        %v1276 = vsel %vm1275, %v1255, %v1274
        %vm1277 = vcmask 1047559
        %v1278 = vsel %vm1277, %v1264, %v1276
        %vm1280 = vcmask 130048
        %v1281 = vsel %vm1280, %v1278, -inf
        %1282 = vmax.xlane.f32.xlu0 %v1281
        %v1283 = vpop.xlane.xlu0 %1282
        %v1285 = vlaneseq
        %v1286 = vshrl.u32 %v1285, 7
        %v1287 = vsub.s32 0, %v1286
        %v1288 = vrot.slane %v1283, %v1287
        %v1289 = vlaneseq
        %v1290 = vshrl.u32 %v1289, 7
        %v1291 = vsub.s32 1, %v1290
        %v1292 = vrot.slane %v1283, %v1291
        %v1293 = vlaneseq
        %v1294 = vshrl.u32 %v1293, 7
        %v1295 = vsub.s32 2, %v1294
        %v1296 = vrot.slane %v1283, %v1295
        %v1297 = vlaneseq
        %v1298 = vshrl.u32 %v1297, 7
        %v1299 = vsub.s32 3, %v1298
        %v1300 = vrot.slane %v1283, %v1299
        %v1301 = vlaneseq
        %v1302 = vshrl.u32 %v1301, 7
        %v1303 = vsub.s32 4, %v1302
        %v1304 = vrot.slane %v1283, %v1303
        %v1305 = vlaneseq
        %v1306 = vshrl.u32 %v1305, 7
        %v1307 = vsub.s32 5, %v1306
        %v1308 = vrot.slane %v1283, %v1307
        %v1309 = vlaneseq
        %v1310 = vshrl.u32 %v1309, 7
        %v1311 = vsub.s32 6, %v1310
        %v1312 = vrot.slane %v1283, %v1311
        %v1313 = vlaneseq
        %v1314 = vshrl.u32 %v1313, 7
        %v1315 = vsub.s32 7, %v1314
        %v1316 = vrot.slane %v1283, %v1315
        %v1325 = vsub.f32 %v1157, %v1288
        %v1326 = vsub.f32 %v1158, %v1288
        %v1327 = vsub.f32 %v1159, %v1292
        %v1328 = vsub.f32 %v1160, %v1292
        %v1329 = vsub.f32 %v1161, %v1296
        %v1330 = vsub.f32 %v1162, %v1296
        %v1331 = vsub.f32 %v1163, %v1300
        %v1332 = vsub.f32 %v1164, %v1300
        %v1333 = vsub.f32 %v1165, %v1304
        %v1334 = vsub.f32 %v1166, %v1304
        %v1335 = vsub.f32 %v1167, %v1308
        %v1336 = vsub.f32 %v1168, %v1308
        %v1337 = vsub.f32 %v1169, %v1312
        %v1338 = vsub.f32 %v1170, %v1312
        %v1339 = vsub.f32 %v1171, %v1316
        %v1340 = vsub.f32 %v1172, %v1316
        %v1341 = vmul.f32 %v1325, 1.442695
        %v1342 = vpow.pop %v1341
        %v1343 = vmul.f32 %v1326, 1.442695
        %v1344 = vpow.pop %v1343
        %v1345 = vmul.f32 %v1327, 1.442695
        %v1346 = vpow.pop %v1345
        %v1347 = vmul.f32 %v1328, 1.442695
        %v1348 = vpow.pop %v1347
        %v1349 = vmul.f32 %v1329, 1.442695
        %v1350 = vpow.pop %v1349
        %v1351 = vmul.f32 %v1330, 1.442695
        %v1352 = vpow.pop %v1351
        %v1353 = vmul.f32 %v1331, 1.442695
        %v1354 = vpow.pop %v1353
        %v1355 = vmul.f32 %v1332, 1.442695
        %v1356 = vpow.pop %v1355
        %v1357 = vmul.f32 %v1333, 1.442695
        %v1358 = vpow.pop %v1357
        %v1359 = vmul.f32 %v1334, 1.442695
        %v1360 = vpow.pop %v1359
        %v1361 = vmul.f32 %v1335, 1.442695
        %v1362 = vpow.pop %v1361
        %v1363 = vmul.f32 %v1336, 1.442695
        %v1364 = vpow.pop %v1363
        %v1365 = vmul.f32 %v1337, 1.442695
        %v1366 = vpow.pop %v1365
        %v1367 = vmul.f32 %v1338, 1.442695
        %v1368 = vpow.pop %v1367
        %v1369 = vmul.f32 %v1339, 1.442695
        %v1370 = vpow.pop %v1369
        %v1371 = vmul.f32 %v1340, 1.442695
        %v1372 = vpow.pop %v1371
        %1389 = vset.pattern.permute.xlu0 0
        %1390 = vperm.xlu0 %1389, %v1342
        %v1391 = vpop.permute.xlu0 %1390
        %1392 = vset.pattern.permute.xlu0 0
        %1393 = vperm.xlu0 %1392, %v1344
        %v1394 = vpop.permute.xlu0 %1393
        %1395 = vset.pattern.permute.xlu0 0
        %1396 = vperm.xlu0 %1395, %v1346
        %v1397 = vpop.permute.xlu0 %1396
        %1398 = vset.pattern.permute.xlu0 0
        %1399 = vperm.xlu0 %1398, %v1348
        %v1400 = vpop.permute.xlu0 %1399
        %1401 = vset.pattern.permute.xlu0 0
        %1402 = vperm.xlu0 %1401, %v1350
        %v1403 = vpop.permute.xlu0 %1402
        %1404 = vset.pattern.permute.xlu0 0
        %1405 = vperm.xlu0 %1404, %v1352
        %v1406 = vpop.permute.xlu0 %1405
        %1407 = vset.pattern.permute.xlu0 0
        %1408 = vperm.xlu0 %1407, %v1354
        %v1409 = vpop.permute.xlu0 %1408
        %1410 = vset.pattern.permute.xlu0 0
        %1411 = vperm.xlu0 %1410, %v1356
        %v1412 = vpop.permute.xlu0 %1411
        %1413 = vset.pattern.permute.xlu0 0
        %1414 = vperm.xlu0 %1413, %v1358
        %v1415 = vpop.permute.xlu0 %1414
        %1416 = vset.pattern.permute.xlu0 0
        %1417 = vperm.xlu0 %1416, %v1360
        %v1418 = vpop.permute.xlu0 %1417
        %1419 = vset.pattern.permute.xlu0 0
        %1420 = vperm.xlu0 %1419, %v1362
        %v1421 = vpop.permute.xlu0 %1420
        %1422 = vset.pattern.permute.xlu0 0
        %1423 = vperm.xlu0 %1422, %v1364
        %v1424 = vpop.permute.xlu0 %1423
        %1425 = vset.pattern.permute.xlu0 0
        %1426 = vperm.xlu0 %1425, %v1366
        %v1427 = vpop.permute.xlu0 %1426
        %1428 = vset.pattern.permute.xlu0 0
        %1429 = vperm.xlu0 %1428, %v1368
        %v1430 = vpop.permute.xlu0 %1429
        %1431 = vset.pattern.permute.xlu0 0
        %1432 = vperm.xlu0 %1431, %v1370
        %v1433 = vpop.permute.xlu0 %1432
        %1434 = vset.pattern.permute.xlu0 0
        %1435 = vperm.xlu0 %1434, %v1372
        %v1436 = vpop.permute.xlu0 %1435
        %v1437 = vlaneseq
        %v1438 = vshrl.u32 %v1437, 7
        %v1439 = vsub.s32 %v1190, %v1438
        %v1440 = vrot.slane %v1391, %v1439
        %v1441 = vlaneseq
        %v1442 = vshrl.u32 %v1441, 7
        %v1443 = vsub.s32 %v1195, %v1442
        %v1444 = vrot.slane %v1394, %v1443
        %v1445 = vsel %vm1200, %v1444, %v1440
        %v1446 = vlaneseq
        %v1447 = vshrl.u32 %v1446, 7
        %v1448 = vsub.s32 %v1190, %v1447
        %v1449 = vrot.slane %v1397, %v1448
        %v1450 = vlaneseq
        %v1451 = vshrl.u32 %v1450, 7
        %v1452 = vsub.s32 %v1195, %v1451
        %v1453 = vrot.slane %v1400, %v1452
        %v1454 = vsel %vm1200, %v1453, %v1449
        %v1455 = vlaneseq
        %v1456 = vshrl.u32 %v1455, 7
        %v1457 = vsub.s32 %v1190, %v1456
        %v1458 = vrot.slane %v1403, %v1457
        %v1459 = vlaneseq
        %v1460 = vshrl.u32 %v1459, 7
        %v1461 = vsub.s32 %v1195, %v1460
        %v1462 = vrot.slane %v1406, %v1461
        %v1463 = vsel %vm1200, %v1462, %v1458
        %v1464 = vlaneseq
        %v1465 = vshrl.u32 %v1464, 7
        %v1466 = vsub.s32 %v1190, %v1465
        %v1467 = vrot.slane %v1409, %v1466
        %v1468 = vlaneseq
        %v1469 = vshrl.u32 %v1468, 7
        %v1470 = vsub.s32 %v1195, %v1469
        %v1471 = vrot.slane %v1412, %v1470
        %v1472 = vsel %vm1200, %v1471, %v1467
        %v1473 = vlaneseq
        %v1474 = vshrl.u32 %v1473, 7
        %v1475 = vsub.s32 %v1190, %v1474
        %v1476 = vrot.slane %v1415, %v1475
        %v1477 = vlaneseq
        %v1478 = vshrl.u32 %v1477, 7
        %v1479 = vsub.s32 %v1195, %v1478
        %v1480 = vrot.slane %v1418, %v1479
        %v1481 = vsel %vm1200, %v1480, %v1476
        %v1482 = vlaneseq
        %v1483 = vshrl.u32 %v1482, 7
        %v1484 = vsub.s32 %v1190, %v1483
        %v1485 = vrot.slane %v1421, %v1484
        %v1486 = vlaneseq
        %v1487 = vshrl.u32 %v1486, 7
        %v1488 = vsub.s32 %v1195, %v1487
        %v1489 = vrot.slane %v1424, %v1488
        %v1490 = vsel %vm1200, %v1489, %v1485
        %v1491 = vlaneseq
        %v1492 = vshrl.u32 %v1491, 7
        %v1493 = vsub.s32 %v1190, %v1492
        %v1494 = vrot.slane %v1427, %v1493
        %v1495 = vlaneseq
        %v1496 = vshrl.u32 %v1495, 7
        %v1497 = vsub.s32 %v1195, %v1496
        %v1498 = vrot.slane %v1430, %v1497
        %v1499 = vsel %vm1200, %v1498, %v1494
        %v1500 = vlaneseq
        %v1501 = vshrl.u32 %v1500, 7
        %v1502 = vsub.s32 %v1190, %v1501
        %v1503 = vrot.slane %v1433, %v1502
        %v1504 = vlaneseq
        %v1505 = vshrl.u32 %v1504, 7
        %v1506 = vsub.s32 %v1195, %v1505
        %v1507 = vrot.slane %v1436, %v1506
        %v1508 = vsel %vm1200, %v1507, %v1503
        %v1509 = vsel %vm1265, %v1454, %v1445
        %v1510 = vsel %vm1267, %v1463, %v1509
        %v1511 = vsel %vm1269, %v1472, %v1510
        %v1512 = vsel %vm1271, %v1481, %v1511
        %v1513 = vsel %vm1273, %v1490, %v1512
        %v1514 = vsel %vm1275, %v1499, %v1513
        %v1515 = vsel %vm1277, %v1508, %v1514
        %v1517 = vsel %vm1280, %v1515, 0.0
        %1518 = vadd.xlane.f32.xlu0 %v1517
        %v1519 = vpop.xlane.xlu0 %1518
        %v1521 = vlaneseq
        %v1522 = vshrl.u32 %v1521, 7
        %v1523 = vsub.s32 0, %v1522
        %v1524 = vrot.slane %v1519, %v1523
        %v1525 = vlaneseq
        %v1526 = vshrl.u32 %v1525, 7
        %v1527 = vsub.s32 1, %v1526
        %v1528 = vrot.slane %v1519, %v1527
        %v1529 = vlaneseq
        %v1530 = vshrl.u32 %v1529, 7
        %v1531 = vsub.s32 2, %v1530
        %v1532 = vrot.slane %v1519, %v1531
        %v1533 = vlaneseq
        %v1534 = vshrl.u32 %v1533, 7
        %v1535 = vsub.s32 3, %v1534
        %v1536 = vrot.slane %v1519, %v1535
        %v1537 = vlaneseq
        %v1538 = vshrl.u32 %v1537, 7
        %v1539 = vsub.s32 4, %v1538
        %v1540 = vrot.slane %v1519, %v1539
        %v1541 = vlaneseq
        %v1542 = vshrl.u32 %v1541, 7
        %v1543 = vsub.s32 5, %v1542
        %v1544 = vrot.slane %v1519, %v1543
        %v1545 = vlaneseq
        %v1546 = vshrl.u32 %v1545, 7
        %v1547 = vsub.s32 6, %v1546
        %v1548 = vrot.slane %v1519, %v1547
        %v1549 = vlaneseq
        %v1550 = vshrl.u32 %v1549, 7
        %v1551 = vsub.s32 7, %v1550
        %v1552 = vrot.slane %v1519, %v1551
        %v1561 = vrcp.pop %v1524
        %v1562 = vmul.f32 %v1342, %v1561
        %v1563 = vmul.f32 %v1344, %v1561
        %v1564 = vrcp.pop %v1528
        %v1565 = vmul.f32 %v1346, %v1564
        %v1566 = vmul.f32 %v1348, %v1564
        %v1567 = vrcp.pop %v1532
        %v1568 = vmul.f32 %v1350, %v1567
        %v1569 = vmul.f32 %v1352, %v1567
        %v1570 = vrcp.pop %v1536
        %v1571 = vmul.f32 %v1354, %v1570
        %v1572 = vmul.f32 %v1356, %v1570
        %v1573 = vrcp.pop %v1540
        %v1574 = vmul.f32 %v1358, %v1573
        %v1575 = vmul.f32 %v1360, %v1573
        %v1576 = vrcp.pop %v1544
        %v1577 = vmul.f32 %v1362, %v1576
        %v1578 = vmul.f32 %v1364, %v1576
        %v1579 = vrcp.pop %v1548
        %v1580 = vmul.f32 %v1366, %v1579
        %v1581 = vmul.f32 %v1368, %v1579
        %v1582 = vrcp.pop %v1552
        %v1583 = vmul.f32 %v1370, %v1582
        %v1584 = vmul.f32 %v1372, %v1582
        %v1586 = vlaneseq
        %v1587 = vshrl.u32 %v1586, 7
        %v1588 = vsub.s32 0, %v1587
        %v1589 = vrot.slane %v701, %v1588
        %1591 = vbcast.lane.b32.xlu0 %v1589, 256
        %v1592 = vpop.permute.xlu0 %1591
        %s1594 = sor.u32 256, 8
        %1595 = vbcast.lane.b32.xlu0 %v1589, %s1594
        %v1596 = vpop.permute.xlu0 %1595
        %v1597 = vlaneseq
        %v1598 = vshrl.u32 %v1597, 7
        %v1599 = vsub.s32 1, %v1598
        %v1600 = vrot.slane %v701, %v1599
        %1602 = vbcast.lane.b32.xlu0 %v1600, 256
        %v1603 = vpop.permute.xlu0 %1602
        %s1605 = sor.u32 256, 8
        %1606 = vbcast.lane.b32.xlu0 %v1600, %s1605
        %v1607 = vpop.permute.xlu0 %1606
        %v1608 = vlaneseq
        %v1609 = vshrl.u32 %v1608, 7
        %v1610 = vsub.s32 2, %v1609
        %v1611 = vrot.slane %v701, %v1610
        %1613 = vbcast.lane.b32.xlu0 %v1611, 256
        %v1614 = vpop.permute.xlu0 %1613
        %s1616 = sor.u32 256, 8
        %1617 = vbcast.lane.b32.xlu0 %v1611, %s1616
        %v1618 = vpop.permute.xlu0 %1617
        %v1619 = vlaneseq
        %v1620 = vshrl.u32 %v1619, 7
        %v1621 = vsub.s32 3, %v1620
        %v1622 = vrot.slane %v701, %v1621
        %1624 = vbcast.lane.b32.xlu0 %v1622, 256
        %v1625 = vpop.permute.xlu0 %1624
        %s1627 = sor.u32 256, 8
        %1628 = vbcast.lane.b32.xlu0 %v1622, %s1627
        %v1629 = vpop.permute.xlu0 %1628
        %v1630 = vlaneseq
        %v1631 = vshrl.u32 %v1630, 7
        %v1632 = vsub.s32 4, %v1631
        %v1633 = vrot.slane %v701, %v1632
        %1635 = vbcast.lane.b32.xlu0 %v1633, 256
        %v1636 = vpop.permute.xlu0 %1635
        %s1638 = sor.u32 256, 8
        %1639 = vbcast.lane.b32.xlu0 %v1633, %s1638
        %v1640 = vpop.permute.xlu0 %1639
        %v1641 = vlaneseq
        %v1642 = vshrl.u32 %v1641, 7
        %v1643 = vsub.s32 5, %v1642
        %v1644 = vrot.slane %v701, %v1643
        %1646 = vbcast.lane.b32.xlu0 %v1644, 256
        %v1647 = vpop.permute.xlu0 %1646
        %s1649 = sor.u32 256, 8
        %1650 = vbcast.lane.b32.xlu0 %v1644, %s1649
        %v1651 = vpop.permute.xlu0 %1650
        %v1652 = vlaneseq
        %v1653 = vshrl.u32 %v1652, 7
        %v1654 = vsub.s32 6, %v1653
        %v1655 = vrot.slane %v701, %v1654
        %1657 = vbcast.lane.b32.xlu0 %v1655, 256
        %v1658 = vpop.permute.xlu0 %1657
        %s1660 = sor.u32 256, 8
        %1661 = vbcast.lane.b32.xlu0 %v1655, %s1660
        %v1662 = vpop.permute.xlu0 %1661
        %v1663 = vlaneseq
        %v1664 = vshrl.u32 %v1663, 7
        %v1665 = vsub.s32 7, %v1664
        %v1666 = vrot.slane %v701, %v1665
        %1668 = vbcast.lane.b32.xlu0 %v1666, 256
        %v1669 = vpop.permute.xlu0 %1668
        %s1671 = sor.u32 256, 8
        %1672 = vbcast.lane.b32.xlu0 %v1666, %s1671
        %v1673 = vpop.permute.xlu0 %1672
        %v1690 = vmul.f32 %v1562, %v1592
        %v1691 = vmul.f32 %v1563, %v1596
        %v1692 = vmul.f32 %v1565, %v1603
        %v1693 = vmul.f32 %v1566, %v1607
        %v1694 = vmul.f32 %v1568, %v1614
        %v1695 = vmul.f32 %v1569, %v1618
        %v1696 = vmul.f32 %v1571, %v1625
        %v1697 = vmul.f32 %v1572, %v1629
        %v1698 = vmul.f32 %v1574, %v1636
        %v1699 = vmul.f32 %v1575, %v1640
        %v1700 = vmul.f32 %v1577, %v1647
        %v1701 = vmul.f32 %v1578, %v1651
        %v1702 = vmul.f32 %v1580, %v1658
        %v1703 = vmul.f32 %v1581, %v1662
        %v1704 = vmul.f32 %v1583, %v1669
        %v1705 = vmul.f32 %v1584, %v1673
        %1722 = vset.pattern.permute.xlu0 0
        %1723 = vperm.xlu0 %1722, %v1690
        %v1724 = vpop.permute.xlu0 %1723
        %1725 = vset.pattern.permute.xlu0 0
        %1726 = vperm.xlu0 %1725, %v1691
        %v1727 = vpop.permute.xlu0 %1726
        %1728 = vset.pattern.permute.xlu0 0
        %1729 = vperm.xlu0 %1728, %v1692
        %v1730 = vpop.permute.xlu0 %1729
        %1731 = vset.pattern.permute.xlu0 0
        %1732 = vperm.xlu0 %1731, %v1693
        %v1733 = vpop.permute.xlu0 %1732
        %1734 = vset.pattern.permute.xlu0 0
        %1735 = vperm.xlu0 %1734, %v1694
        %v1736 = vpop.permute.xlu0 %1735
        %1737 = vset.pattern.permute.xlu0 0
        %1738 = vperm.xlu0 %1737, %v1695
        %v1739 = vpop.permute.xlu0 %1738
        %1740 = vset.pattern.permute.xlu0 0
        %1741 = vperm.xlu0 %1740, %v1696
        %v1742 = vpop.permute.xlu0 %1741
        %1743 = vset.pattern.permute.xlu0 0
        %1744 = vperm.xlu0 %1743, %v1697
        %v1745 = vpop.permute.xlu0 %1744
        %1746 = vset.pattern.permute.xlu0 0
        %1747 = vperm.xlu0 %1746, %v1698
        %v1748 = vpop.permute.xlu0 %1747
        %1749 = vset.pattern.permute.xlu0 0
        %1750 = vperm.xlu0 %1749, %v1699
        %v1751 = vpop.permute.xlu0 %1750
        %1752 = vset.pattern.permute.xlu0 0
        %1753 = vperm.xlu0 %1752, %v1700
        %v1754 = vpop.permute.xlu0 %1753
        %1755 = vset.pattern.permute.xlu0 0
        %1756 = vperm.xlu0 %1755, %v1701
        %v1757 = vpop.permute.xlu0 %1756
        %1758 = vset.pattern.permute.xlu0 0
        %1759 = vperm.xlu0 %1758, %v1702
        %v1760 = vpop.permute.xlu0 %1759
        %1761 = vset.pattern.permute.xlu0 0
        %1762 = vperm.xlu0 %1761, %v1703
        %v1763 = vpop.permute.xlu0 %1762
        %1764 = vset.pattern.permute.xlu0 0
        %1765 = vperm.xlu0 %1764, %v1704
        %v1766 = vpop.permute.xlu0 %1765
        %1767 = vset.pattern.permute.xlu0 0
        %1768 = vperm.xlu0 %1767, %v1705
        %v1769 = vpop.permute.xlu0 %1768
        %v1770 = vlaneseq
        %v1771 = vshrl.u32 %v1770, 7
        %v1772 = vsub.s32 %v1190, %v1771
        %v1773 = vrot.slane %v1724, %v1772
        %v1774 = vlaneseq
        %v1775 = vshrl.u32 %v1774, 7
        %v1776 = vsub.s32 %v1195, %v1775
        %v1777 = vrot.slane %v1727, %v1776
        %v1778 = vsel %vm1200, %v1777, %v1773
        %v1779 = vlaneseq
        %v1780 = vshrl.u32 %v1779, 7
        %v1781 = vsub.s32 %v1190, %v1780
        %v1782 = vrot.slane %v1730, %v1781
        %v1783 = vlaneseq
        %v1784 = vshrl.u32 %v1783, 7
        %v1785 = vsub.s32 %v1195, %v1784
        %v1786 = vrot.slane %v1733, %v1785
        %v1787 = vsel %vm1200, %v1786, %v1782
        %v1788 = vlaneseq
        %v1789 = vshrl.u32 %v1788, 7
        %v1790 = vsub.s32 %v1190, %v1789
        %v1791 = vrot.slane %v1736, %v1790
        %v1792 = vlaneseq
        %v1793 = vshrl.u32 %v1792, 7
        %v1794 = vsub.s32 %v1195, %v1793
        %v1795 = vrot.slane %v1739, %v1794
        %v1796 = vsel %vm1200, %v1795, %v1791
        %v1797 = vlaneseq
        %v1798 = vshrl.u32 %v1797, 7
        %v1799 = vsub.s32 %v1190, %v1798
        %v1800 = vrot.slane %v1742, %v1799
        %v1801 = vlaneseq
        %v1802 = vshrl.u32 %v1801, 7
        %v1803 = vsub.s32 %v1195, %v1802
        %v1804 = vrot.slane %v1745, %v1803
        %v1805 = vsel %vm1200, %v1804, %v1800
        %v1806 = vlaneseq
        %v1807 = vshrl.u32 %v1806, 7
        %v1808 = vsub.s32 %v1190, %v1807
        %v1809 = vrot.slane %v1748, %v1808
        %v1810 = vlaneseq
        %v1811 = vshrl.u32 %v1810, 7
        %v1812 = vsub.s32 %v1195, %v1811
        %v1813 = vrot.slane %v1751, %v1812
        %v1814 = vsel %vm1200, %v1813, %v1809
        %v1815 = vlaneseq
        %v1816 = vshrl.u32 %v1815, 7
        %v1817 = vsub.s32 %v1190, %v1816
        %v1818 = vrot.slane %v1754, %v1817
        %v1819 = vlaneseq
        %v1820 = vshrl.u32 %v1819, 7
        %v1821 = vsub.s32 %v1195, %v1820
        %v1822 = vrot.slane %v1757, %v1821
        %v1823 = vsel %vm1200, %v1822, %v1818
        %v1824 = vlaneseq
        %v1825 = vshrl.u32 %v1824, 7
        %v1826 = vsub.s32 %v1190, %v1825
        %v1827 = vrot.slane %v1760, %v1826
        %v1828 = vlaneseq
        %v1829 = vshrl.u32 %v1828, 7
        %v1830 = vsub.s32 %v1195, %v1829
        %v1831 = vrot.slane %v1763, %v1830
        %v1832 = vsel %vm1200, %v1831, %v1827
        %v1833 = vlaneseq
        %v1834 = vshrl.u32 %v1833, 7
        %v1835 = vsub.s32 %v1190, %v1834
        %v1836 = vrot.slane %v1766, %v1835
        %v1837 = vlaneseq
        %v1838 = vshrl.u32 %v1837, 7
        %v1839 = vsub.s32 %v1195, %v1838
        %v1840 = vrot.slane %v1769, %v1839
        %v1841 = vsel %vm1200, %v1840, %v1836
        %v1842 = vsel %vm1265, %v1787, %v1778
        %v1843 = vsel %vm1267, %v1796, %v1842
        %v1844 = vsel %vm1269, %v1805, %v1843
        %v1845 = vsel %vm1271, %v1814, %v1844
        %v1846 = vsel %vm1273, %v1823, %v1845
        %v1847 = vsel %vm1275, %v1832, %v1846
        %v1848 = vsel %vm1277, %v1841, %v1847
        %1850 = vst.msk [vmem:[%s678] sm:$0xff] %vm1280, %v1848
        %v1851 = vadd.f32 %v700, %v1848
        %1852 = vst.msk [vmem:[%s685] sm:$0xff] %vm1280, %v1851
        %v1853 = vld [vmem:[%s695] sm:$0xf]
        %v1854 = vld [vmem:[%s695 + $0x4] sm:$0xf]
        %v1855 = vld [vmem:[%s695 + $0x8] sm:$0xf]
        %v1856 = vld [vmem:[%s695 + $0xc] sm:$0xf]
        %v1857 = vld [vmem:[%s695 + $0x10] sm:$0xf]
        %v1858 = vld [vmem:[%s695 + $0x14] sm:$0xf]
        %v1859 = vld [vmem:[%s695 + $0x18] sm:$0xf]
        %v1860 = vld [vmem:[%s695 + $0x1c] sm:$0xf]
        %v1861 = vld [vmem:[%s695 + $0x20] sm:$0xf]
        %v1862 = vld [vmem:[%s695 + $0x24] sm:$0xf]
        %v1863 = vld [vmem:[%s695 + $0x28] sm:$0xf]
        %v1864 = vld [vmem:[%s695 + $0x2c] sm:$0xf]
        %v1865 = vld [vmem:[%s695 + $0x30] sm:$0xf]
        %v1866 = vld [vmem:[%s695 + $0x34] sm:$0xf]
        %v1867 = vld [vmem:[%s695 + $0x38] sm:$0xf]
        %v1868 = vld [vmem:[%s695 + $0x3c] sm:$0xf]
        %v1869 = vpack.c.bf16 %v1691, %v1690
        %v1870 = vpack.c.bf16 %v1693, %v1692
        %v1871 = vpack.c.bf16 %v1695, %v1694
        %v1872 = vpack.c.bf16 %v1697, %v1696
        %v1873 = vpack.c.bf16 %v1699, %v1698
        %v1874 = vpack.c.bf16 %v1701, %v1700
        %v1875 = vpack.c.bf16 %v1703, %v1702
        %v1876 = vpack.c.bf16 %v1705, %v1704
        %v1878 = vunpack.c.l.b16 %v1869
        %v1879 = vunpack.c.h.b16 %v1869
        %1880 = vset.pattern.permute.xlu0 0
        %1881 = vperm.xlu0 %1880, %v1878
        %v1882 = vpop.permute.xlu0 %1881
        %1883 = vset.pattern.permute.xlu0 0
        %1884 = vperm.xlu0 %1883, %v1879
        %v1885 = vpop.permute.xlu0 %1884
        %v1886 = vlaneseq
        %v1887 = vshrl.u32 %v1886, 7
        %v1888 = vsub.s32 %v1190, %v1887
        %v1889 = vrot.slane %v1882, %v1888
        %v1890 = vlaneseq
        %v1891 = vshrl.u32 %v1890, 7
        %v1892 = vsub.s32 %v1195, %v1891
        %v1893 = vrot.slane %v1885, %v1892
        %v1894 = vsel %vm1200, %v1893, %v1889
        %v1895 = vpack.c.b16 %v1894, %v1894
        %v1898 = vunpack.c.l.b16 %v1853
        %v1899 = vunpack.c.l.b16 %v1854
        %v1900 = vpack.c.b16 %v1899, %v1898
        %v1903 = vsel %vm1280, %v1895, 0
        %1905 = vmatprep.subr.bf16.mxu0 0
        %1906 = vmatpush1.bf16.msra.mxu0 %v1900
        %1907 = vmatprep.subr.bf16.mxu0 0
        %1908 = vmatpush1.bf16.msra.mxu0 0
        %1909 = vmatprep.subr.bf16.mxu0 0
        %1910 = vmatpush1.bf16.msra.mxu0 0
        %1911 = vmatprep.subr.bf16.mxu0 0
        %1912 = vmatpush1.bf16.msra.mxu0 0
        %1913 = vmatprep.subr.bf16.mxu0 0
        %1914 = vmatpush1.bf16.msra.mxu0 0
        %1915 = vmatprep.subr.bf16.mxu0 0
        %1916 = vmatpush1.bf16.msra.mxu0 0
        %1917 = vmatprep.subr.bf16.mxu0 0
        %1918 = vmatpush1.bf16.msra.mxu0 0
        %1919 = vmatprep.subr.bf16.mxu0 0
        %1920 = vmatpush1.bf16.msra.mxu0 0
        %1921 = vmatprep.subr.bf16.mxu0 0
        %1922 = vmatpush1.bf16.msra.mxu0 0
        %1923 = vmatprep.subr.bf16.mxu0 0
        %1924 = vmatpush1.bf16.msra.mxu0 0
        %1925 = vmatprep.subr.bf16.mxu0 0
        %1926 = vmatpush1.bf16.msra.mxu0 0
        %1927 = vmatprep.subr.bf16.mxu0 0
        %1928 = vmatpush1.bf16.msra.mxu0 0
        %1929 = vmatprep.subr.bf16.mxu0 0
        %1930 = vmatpush1.bf16.msra.mxu0 0
        %1931 = vmatprep.subr.bf16.mxu0 0
        %1932 = vmatpush1.bf16.msra.mxu0 0
        %1933 = vmatprep.subr.bf16.mxu0 0
        %1934 = vmatpush1.bf16.msra.mxu0 0
        %1935 = vmatprep.subr.bf16.mxu0 0
        %1936 = vmatpush1.bf16.msra.mxu0 0
        %1937 = vmatprep.mubr.bf16.mxu0 0
        %1938 = vmatmul.mubr.bf16.gmra.mrb[0].mxu0 %v1903
        %v1939 = vpop.f32.mrb[0].mxu0
        %v1940 = vadd.f32 0.0, %v1939
        %v1941 = vpop.f32.mrb[0].mxu0
        %v1942 = vpop.f32.mrb[0].mxu0
        %v1943 = vpop.f32.mrb[0].mxu0
        %1944 = vdwg.mxu0
        %v1946 = vunpack.c.l.b16 %v1870
        %v1947 = vunpack.c.h.b16 %v1870
        %1948 = vset.pattern.permute.xlu0 0
        %1949 = vperm.xlu0 %1948, %v1946
        %v1950 = vpop.permute.xlu0 %1949
        %1951 = vset.pattern.permute.xlu0 0
        %1952 = vperm.xlu0 %1951, %v1947
        %v1953 = vpop.permute.xlu0 %1952
        %v1954 = vlaneseq
        %v1955 = vshrl.u32 %v1954, 7
        %v1956 = vsub.s32 %v1190, %v1955
        %v1957 = vrot.slane %v1950, %v1956
        %v1958 = vlaneseq
        %v1959 = vshrl.u32 %v1958, 7
        %v1960 = vsub.s32 %v1195, %v1959
        %v1961 = vrot.slane %v1953, %v1960
        %v1962 = vsel %vm1200, %v1961, %v1957
        %v1963 = vpack.c.b16 %v1962, %v1962
        %v1966 = vunpack.c.l.b16 %v1855
        %v1967 = vunpack.c.l.b16 %v1856
        %v1968 = vpack.c.b16 %v1967, %v1966
        %v1971 = vsel %vm1280, %v1963, 0
        %1973 = vmatprep.subr.bf16.mxu0 0
        %1974 = vmatpush1.bf16.msra.mxu0 %v1968
        %1975 = vmatprep.subr.bf16.mxu0 0
        %1976 = vmatpush1.bf16.msra.mxu0 0
        %1977 = vmatprep.subr.bf16.mxu0 0
        %1978 = vmatpush1.bf16.msra.mxu0 0
        %1979 = vmatprep.subr.bf16.mxu0 0
        %1980 = vmatpush1.bf16.msra.mxu0 0
        %1981 = vmatprep.subr.bf16.mxu0 0
        %1982 = vmatpush1.bf16.msra.mxu0 0
        %1983 = vmatprep.subr.bf16.mxu0 0
        %1984 = vmatpush1.bf16.msra.mxu0 0
        %1985 = vmatprep.subr.bf16.mxu0 0
        %1986 = vmatpush1.bf16.msra.mxu0 0
        %1987 = vmatprep.subr.bf16.mxu0 0
        %1988 = vmatpush1.bf16.msra.mxu0 0
        %1989 = vmatprep.subr.bf16.mxu0 0
        %1990 = vmatpush1.bf16.msra.mxu0 0
        %1991 = vmatprep.subr.bf16.mxu0 0
        %1992 = vmatpush1.bf16.msra.mxu0 0
        %1993 = vmatprep.subr.bf16.mxu0 0
        %1994 = vmatpush1.bf16.msra.mxu0 0
        %1995 = vmatprep.subr.bf16.mxu0 0
        %1996 = vmatpush1.bf16.msra.mxu0 0
        %1997 = vmatprep.subr.bf16.mxu0 0
        %1998 = vmatpush1.bf16.msra.mxu0 0
        %1999 = vmatprep.subr.bf16.mxu0 0
        %2000 = vmatpush1.bf16.msra.mxu0 0
        %2001 = vmatprep.subr.bf16.mxu0 0
        %2002 = vmatpush1.bf16.msra.mxu0 0
        %2003 = vmatprep.subr.bf16.mxu0 0
        %2004 = vmatpush1.bf16.msra.mxu0 0
        %2005 = vmatprep.mubr.bf16.mxu0 0
        %2006 = vmatmul.mubr.bf16.gmra.mrb[0].mxu0 %v1971
        %v2007 = vpop.f32.mrb[0].mxu0
        %v2008 = vadd.f32 0.0, %v2007
        %v2009 = vpop.f32.mrb[0].mxu0
        %v2010 = vpop.f32.mrb[0].mxu0
        %v2011 = vpop.f32.mrb[0].mxu0
        %2012 = vdwg.mxu0
        %v2014 = vunpack.c.l.b16 %v1871
        %v2015 = vunpack.c.h.b16 %v1871
        %2016 = vset.pattern.permute.xlu0 0
        %2017 = vperm.xlu0 %2016, %v2014
        %v2018 = vpop.permute.xlu0 %2017
        %2019 = vset.pattern.permute.xlu0 0
        %2020 = vperm.xlu0 %2019, %v2015
        %v2021 = vpop.permute.xlu0 %2020
        %v2022 = vlaneseq
        %v2023 = vshrl.u32 %v2022, 7
        %v2024 = vsub.s32 %v1190, %v2023
        %v2025 = vrot.slane %v2018, %v2024
        %v2026 = vlaneseq
        %v2027 = vshrl.u32 %v2026, 7
        %v2028 = vsub.s32 %v1195, %v2027
        %v2029 = vrot.slane %v2021, %v2028
        %v2030 = vsel %vm1200, %v2029, %v2025
        %v2031 = vpack.c.b16 %v2030, %v2030
        %v2034 = vunpack.c.l.b16 %v1857
        %v2035 = vunpack.c.l.b16 %v1858
        %v2036 = vpack.c.b16 %v2035, %v2034
        %v2039 = vsel %vm1280, %v2031, 0
        %2041 = vmatprep.subr.bf16.mxu0 0
        %2042 = vmatpush1.bf16.msra.mxu0 %v2036
        %2043 = vmatprep.subr.bf16.mxu0 0
        %2044 = vmatpush1.bf16.msra.mxu0 0
        %2045 = vmatprep.subr.bf16.mxu0 0
        %2046 = vmatpush1.bf16.msra.mxu0 0
        %2047 = vmatprep.subr.bf16.mxu0 0
        %2048 = vmatpush1.bf16.msra.mxu0 0
        %2049 = vmatprep.subr.bf16.mxu0 0
        %2050 = vmatpush1.bf16.msra.mxu0 0
        %2051 = vmatprep.subr.bf16.mxu0 0
        %2052 = vmatpush1.bf16.msra.mxu0 0
        %2053 = vmatprep.subr.bf16.mxu0 0
        %2054 = vmatpush1.bf16.msra.mxu0 0
        %2055 = vmatprep.subr.bf16.mxu0 0
        %2056 = vmatpush1.bf16.msra.mxu0 0
        %2057 = vmatprep.subr.bf16.mxu0 0
        %2058 = vmatpush1.bf16.msra.mxu0 0
        %2059 = vmatprep.subr.bf16.mxu0 0
        %2060 = vmatpush1.bf16.msra.mxu0 0
        %2061 = vmatprep.subr.bf16.mxu0 0
        %2062 = vmatpush1.bf16.msra.mxu0 0
        %2063 = vmatprep.subr.bf16.mxu0 0
        %2064 = vmatpush1.bf16.msra.mxu0 0
        %2065 = vmatprep.subr.bf16.mxu0 0
        %2066 = vmatpush1.bf16.msra.mxu0 0
        %2067 = vmatprep.subr.bf16.mxu0 0
        %2068 = vmatpush1.bf16.msra.mxu0 0
        %2069 = vmatprep.subr.bf16.mxu0 0
        %2070 = vmatpush1.bf16.msra.mxu0 0
        %2071 = vmatprep.subr.bf16.mxu0 0
        %2072 = vmatpush1.bf16.msra.mxu0 0
        %2073 = vmatprep.mubr.bf16.mxu0 0
        %2074 = vmatmul.mubr.bf16.gmra.mrb[0].mxu0 %v2039
        %v2075 = vpop.f32.mrb[0].mxu0
        %v2076 = vadd.f32 0.0, %v2075
        %v2077 = vpop.f32.mrb[0].mxu0
        %v2078 = vpop.f32.mrb[0].mxu0
        %v2079 = vpop.f32.mrb[0].mxu0
        %2080 = vdwg.mxu0
        %v2082 = vunpack.c.l.b16 %v1872
        %v2083 = vunpack.c.h.b16 %v1872
        %2084 = vset.pattern.permute.xlu0 0
        %2085 = vperm.xlu0 %2084, %v2082
        %v2086 = vpop.permute.xlu0 %2085
        %2087 = vset.pattern.permute.xlu0 0
        %2088 = vperm.xlu0 %2087, %v2083
        %v2089 = vpop.permute.xlu0 %2088
        %v2090 = vlaneseq
        %v2091 = vshrl.u32 %v2090, 7
        %v2092 = vsub.s32 %v1190, %v2091
        %v2093 = vrot.slane %v2086, %v2092
        %v2094 = vlaneseq
        %v2095 = vshrl.u32 %v2094, 7
        %v2096 = vsub.s32 %v1195, %v2095
        %v2097 = vrot.slane %v2089, %v2096
        %v2098 = vsel %vm1200, %v2097, %v2093
        %v2099 = vpack.c.b16 %v2098, %v2098
        %v2102 = vunpack.c.l.b16 %v1859
        %v2103 = vunpack.c.l.b16 %v1860
        %v2104 = vpack.c.b16 %v2103, %v2102
        %v2107 = vsel %vm1280, %v2099, 0
        %2109 = vmatprep.subr.bf16.mxu0 0
        %2110 = vmatpush1.bf16.msra.mxu0 %v2104
        %2111 = vmatprep.subr.bf16.mxu0 0
        %2112 = vmatpush1.bf16.msra.mxu0 0
        %2113 = vmatprep.subr.bf16.mxu0 0
        %2114 = vmatpush1.bf16.msra.mxu0 0
        %2115 = vmatprep.subr.bf16.mxu0 0
        %2116 = vmatpush1.bf16.msra.mxu0 0
        %2117 = vmatprep.subr.bf16.mxu0 0
        %2118 = vmatpush1.bf16.msra.mxu0 0
        %2119 = vmatprep.subr.bf16.mxu0 0
        %2120 = vmatpush1.bf16.msra.mxu0 0
        %2121 = vmatprep.subr.bf16.mxu0 0
        %2122 = vmatpush1.bf16.msra.mxu0 0
        %2123 = vmatprep.subr.bf16.mxu0 0
        %2124 = vmatpush1.bf16.msra.mxu0 0
        %2125 = vmatprep.subr.bf16.mxu0 0
        %2126 = vmatpush1.bf16.msra.mxu0 0
        %2127 = vmatprep.subr.bf16.mxu0 0
        %2128 = vmatpush1.bf16.msra.mxu0 0
        %2129 = vmatprep.subr.bf16.mxu0 0
        %2130 = vmatpush1.bf16.msra.mxu0 0
        %2131 = vmatprep.subr.bf16.mxu0 0
        %2132 = vmatpush1.bf16.msra.mxu0 0
        %2133 = vmatprep.subr.bf16.mxu0 0
        %2134 = vmatpush1.bf16.msra.mxu0 0
        %2135 = vmatprep.subr.bf16.mxu0 0
        %2136 = vmatpush1.bf16.msra.mxu0 0
        %2137 = vmatprep.subr.bf16.mxu0 0
        %2138 = vmatpush1.bf16.msra.mxu0 0
        %2139 = vmatprep.subr.bf16.mxu0 0
        %2140 = vmatpush1.bf16.msra.mxu0 0
        %2141 = vmatprep.mubr.bf16.mxu0 0
        %2142 = vmatmul.mubr.bf16.gmra.mrb[0].mxu0 %v2107
        %v2143 = vpop.f32.mrb[0].mxu0
        %v2144 = vadd.f32 0.0, %v2143
        %v2145 = vpop.f32.mrb[0].mxu0
        %v2146 = vpop.f32.mrb[0].mxu0
        %v2147 = vpop.f32.mrb[0].mxu0
        %2148 = vdwg.mxu0
        %v2150 = vunpack.c.l.b16 %v1873
        %v2151 = vunpack.c.h.b16 %v1873
        %2152 = vset.pattern.permute.xlu0 0
        %2153 = vperm.xlu0 %2152, %v2150
        %v2154 = vpop.permute.xlu0 %2153
        %2155 = vset.pattern.permute.xlu0 0
        %2156 = vperm.xlu0 %2155, %v2151
        %v2157 = vpop.permute.xlu0 %2156
        %v2158 = vlaneseq
        %v2159 = vshrl.u32 %v2158, 7
        %v2160 = vsub.s32 %v1190, %v2159
        %v2161 = vrot.slane %v2154, %v2160
        %v2162 = vlaneseq
        %v2163 = vshrl.u32 %v2162, 7
        %v2164 = vsub.s32 %v1195, %v2163
        %v2165 = vrot.slane %v2157, %v2164
        %v2166 = vsel %vm1200, %v2165, %v2161
        %v2167 = vpack.c.b16 %v2166, %v2166
        %v2170 = vunpack.c.l.b16 %v1861
        %v2171 = vunpack.c.l.b16 %v1862
        %v2172 = vpack.c.b16 %v2171, %v2170
        %v2175 = vsel %vm1280, %v2167, 0
        %2177 = vmatprep.subr.bf16.mxu0 0
        %2178 = vmatpush1.bf16.msra.mxu0 %v2172
        %2179 = vmatprep.subr.bf16.mxu0 0
        %2180 = vmatpush1.bf16.msra.mxu0 0
        %2181 = vmatprep.subr.bf16.mxu0 0
        %2182 = vmatpush1.bf16.msra.mxu0 0
        %2183 = vmatprep.subr.bf16.mxu0 0
        %2184 = vmatpush1.bf16.msra.mxu0 0
        %2185 = vmatprep.subr.bf16.mxu0 0
        %2186 = vmatpush1.bf16.msra.mxu0 0
        %2187 = vmatprep.subr.bf16.mxu0 0
        %2188 = vmatpush1.bf16.msra.mxu0 0
        %2189 = vmatprep.subr.bf16.mxu0 0
        %2190 = vmatpush1.bf16.msra.mxu0 0
        %2191 = vmatprep.subr.bf16.mxu0 0
        %2192 = vmatpush1.bf16.msra.mxu0 0
        %2193 = vmatprep.subr.bf16.mxu0 0
        %2194 = vmatpush1.bf16.msra.mxu0 0
        %2195 = vmatprep.subr.bf16.mxu0 0
        %2196 = vmatpush1.bf16.msra.mxu0 0
        %2197 = vmatprep.subr.bf16.mxu0 0
        %2198 = vmatpush1.bf16.msra.mxu0 0
        %2199 = vmatprep.subr.bf16.mxu0 0
        %2200 = vmatpush1.bf16.msra.mxu0 0
        %2201 = vmatprep.subr.bf16.mxu0 0
        %2202 = vmatpush1.bf16.msra.mxu0 0
        %2203 = vmatprep.subr.bf16.mxu0 0
        %2204 = vmatpush1.bf16.msra.mxu0 0
        %2205 = vmatprep.subr.bf16.mxu0 0
        %2206 = vmatpush1.bf16.msra.mxu0 0
        %2207 = vmatprep.subr.bf16.mxu0 0
        %2208 = vmatpush1.bf16.msra.mxu0 0
        %2209 = vmatprep.mubr.bf16.mxu0 0
        %2210 = vmatmul.mubr.bf16.gmra.mrb[0].mxu0 %v2175
        %v2211 = vpop.f32.mrb[0].mxu0
        %v2212 = vadd.f32 0.0, %v2211
        %v2213 = vpop.f32.mrb[0].mxu0
        %v2214 = vpop.f32.mrb[0].mxu0
        %v2215 = vpop.f32.mrb[0].mxu0
        %2216 = vdwg.mxu0
        %v2218 = vunpack.c.l.b16 %v1874
        %v2219 = vunpack.c.h.b16 %v1874
        %2220 = vset.pattern.permute.xlu0 0
        %2221 = vperm.xlu0 %2220, %v2218
        %v2222 = vpop.permute.xlu0 %2221
        %2223 = vset.pattern.permute.xlu0 0
        %2224 = vperm.xlu0 %2223, %v2219
        %v2225 = vpop.permute.xlu0 %2224
        %v2226 = vlaneseq
        %v2227 = vshrl.u32 %v2226, 7
        %v2228 = vsub.s32 %v1190, %v2227
        %v2229 = vrot.slane %v2222, %v2228
        %v2230 = vlaneseq
        %v2231 = vshrl.u32 %v2230, 7
        %v2232 = vsub.s32 %v1195, %v2231
        %v2233 = vrot.slane %v2225, %v2232
        %v2234 = vsel %vm1200, %v2233, %v2229
        %v2235 = vpack.c.b16 %v2234, %v2234
        %v2238 = vunpack.c.l.b16 %v1863
        %v2239 = vunpack.c.l.b16 %v1864
        %v2240 = vpack.c.b16 %v2239, %v2238
        %v2243 = vsel %vm1280, %v2235, 0
        %2245 = vmatprep.subr.bf16.mxu0 0
        %2246 = vmatpush1.bf16.msra.mxu0 %v2240
        %2247 = vmatprep.subr.bf16.mxu0 0
        %2248 = vmatpush1.bf16.msra.mxu0 0
        %2249 = vmatprep.subr.bf16.mxu0 0
        %2250 = vmatpush1.bf16.msra.mxu0 0
        %2251 = vmatprep.subr.bf16.mxu0 0
        %2252 = vmatpush1.bf16.msra.mxu0 0
        %2253 = vmatprep.subr.bf16.mxu0 0
        %2254 = vmatpush1.bf16.msra.mxu0 0
        %2255 = vmatprep.subr.bf16.mxu0 0
        %2256 = vmatpush1.bf16.msra.mxu0 0
        %2257 = vmatprep.subr.bf16.mxu0 0
        %2258 = vmatpush1.bf16.msra.mxu0 0
        %2259 = vmatprep.subr.bf16.mxu0 0
        %2260 = vmatpush1.bf16.msra.mxu0 0
        %2261 = vmatprep.subr.bf16.mxu0 0
        %2262 = vmatpush1.bf16.msra.mxu0 0
        %2263 = vmatprep.subr.bf16.mxu0 0
        %2264 = vmatpush1.bf16.msra.mxu0 0
        %2265 = vmatprep.subr.bf16.mxu0 0
        %2266 = vmatpush1.bf16.msra.mxu0 0
        %2267 = vmatprep.subr.bf16.mxu0 0
        %2268 = vmatpush1.bf16.msra.mxu0 0
        %2269 = vmatprep.subr.bf16.mxu0 0
        %2270 = vmatpush1.bf16.msra.mxu0 0
        %2271 = vmatprep.subr.bf16.mxu0 0
        %2272 = vmatpush1.bf16.msra.mxu0 0
        %2273 = vmatprep.subr.bf16.mxu0 0
        %2274 = vmatpush1.bf16.msra.mxu0 0
        %2275 = vmatprep.subr.bf16.mxu0 0
        %2276 = vmatpush1.bf16.msra.mxu0 0
        %2277 = vmatprep.mubr.bf16.mxu0 0
        %2278 = vmatmul.mubr.bf16.gmra.mrb[0].mxu0 %v2243
        %v2279 = vpop.f32.mrb[0].mxu0
        %v2280 = vadd.f32 0.0, %v2279
        %v2281 = vpop.f32.mrb[0].mxu0
        %v2282 = vpop.f32.mrb[0].mxu0
        %v2283 = vpop.f32.mrb[0].mxu0
        %2284 = vdwg.mxu0
        %v2286 = vunpack.c.l.b16 %v1875
        %v2287 = vunpack.c.h.b16 %v1875
        %2288 = vset.pattern.permute.xlu0 0
        %2289 = vperm.xlu0 %2288, %v2286
        %v2290 = vpop.permute.xlu0 %2289
        %2291 = vset.pattern.permute.xlu0 0
        %2292 = vperm.xlu0 %2291, %v2287
        %v2293 = vpop.permute.xlu0 %2292
        %v2294 = vlaneseq
        %v2295 = vshrl.u32 %v2294, 7
        %v2296 = vsub.s32 %v1190, %v2295
        %v2297 = vrot.slane %v2290, %v2296
        %v2298 = vlaneseq
        %v2299 = vshrl.u32 %v2298, 7
        %v2300 = vsub.s32 %v1195, %v2299
        %v2301 = vrot.slane %v2293, %v2300
        %v2302 = vsel %vm1200, %v2301, %v2297
        %v2303 = vpack.c.b16 %v2302, %v2302
        %v2306 = vunpack.c.l.b16 %v1865
        %v2307 = vunpack.c.l.b16 %v1866
        %v2308 = vpack.c.b16 %v2307, %v2306
        %v2311 = vsel %vm1280, %v2303, 0
        %2313 = vmatprep.subr.bf16.mxu0 0
        %2314 = vmatpush1.bf16.msra.mxu0 %v2308
        %2315 = vmatprep.subr.bf16.mxu0 0
        %2316 = vmatpush1.bf16.msra.mxu0 0
        %2317 = vmatprep.subr.bf16.mxu0 0
        %2318 = vmatpush1.bf16.msra.mxu0 0
        %2319 = vmatprep.subr.bf16.mxu0 0
        %2320 = vmatpush1.bf16.msra.mxu0 0
        %2321 = vmatprep.subr.bf16.mxu0 0
        %2322 = vmatpush1.bf16.msra.mxu0 0
        %2323 = vmatprep.subr.bf16.mxu0 0
        %2324 = vmatpush1.bf16.msra.mxu0 0
        %2325 = vmatprep.subr.bf16.mxu0 0
        %2326 = vmatpush1.bf16.msra.mxu0 0
        %2327 = vmatprep.subr.bf16.mxu0 0
        %2328 = vmatpush1.bf16.msra.mxu0 0
        %2329 = vmatprep.subr.bf16.mxu0 0
        %2330 = vmatpush1.bf16.msra.mxu0 0
        %2331 = vmatprep.subr.bf16.mxu0 0
        %2332 = vmatpush1.bf16.msra.mxu0 0
        %2333 = vmatprep.subr.bf16.mxu0 0
        %2334 = vmatpush1.bf16.msra.mxu0 0
        %2335 = vmatprep.subr.bf16.mxu0 0
        %2336 = vmatpush1.bf16.msra.mxu0 0
        %2337 = vmatprep.subr.bf16.mxu0 0
        %2338 = vmatpush1.bf16.msra.mxu0 0
        %2339 = vmatprep.subr.bf16.mxu0 0
        %2340 = vmatpush1.bf16.msra.mxu0 0
        %2341 = vmatprep.subr.bf16.mxu0 0
        %2342 = vmatpush1.bf16.msra.mxu0 0
        %2343 = vmatprep.subr.bf16.mxu0 0
        %2344 = vmatpush1.bf16.msra.mxu0 0
        %2345 = vmatprep.mubr.bf16.mxu0 0
        %2346 = vmatmul.mubr.bf16.gmra.mrb[0].mxu0 %v2311
        %v2347 = vpop.f32.mrb[0].mxu0
        %v2348 = vadd.f32 0.0, %v2347
        %v2349 = vpop.f32.mrb[0].mxu0
        %v2350 = vpop.f32.mrb[0].mxu0
        %v2351 = vpop.f32.mrb[0].mxu0
        %2352 = vdwg.mxu0
        %v2354 = vunpack.c.l.b16 %v1876
        %v2355 = vunpack.c.h.b16 %v1876
        %2356 = vset.pattern.permute.xlu0 0
        %2357 = vperm.xlu0 %2356, %v2354
        %v2358 = vpop.permute.xlu0 %2357
        %2359 = vset.pattern.permute.xlu0 0
        %2360 = vperm.xlu0 %2359, %v2355
        %v2361 = vpop.permute.xlu0 %2360
        %v2362 = vlaneseq
        %v2363 = vshrl.u32 %v2362, 7
        %v2364 = vsub.s32 %v1190, %v2363
        %v2365 = vrot.slane %v2358, %v2364
        %v2366 = vlaneseq
        %v2367 = vshrl.u32 %v2366, 7
        %v2368 = vsub.s32 %v1195, %v2367
        %v2369 = vrot.slane %v2361, %v2368
        %v2370 = vsel %vm1200, %v2369, %v2365
        %v2371 = vpack.c.b16 %v2370, %v2370
        %v2374 = vunpack.c.l.b16 %v1867
        %v2375 = vunpack.c.l.b16 %v1868
        %v2376 = vpack.c.b16 %v2375, %v2374
        %v2379 = vsel %vm1280, %v2371, 0
        %2381 = vmatprep.subr.bf16.mxu0 0
        %2382 = vmatpush1.bf16.msra.mxu0 %v2376
        %2383 = vmatprep.subr.bf16.mxu0 0
        %2384 = vmatpush1.bf16.msra.mxu0 0
        %2385 = vmatprep.subr.bf16.mxu0 0
        %2386 = vmatpush1.bf16.msra.mxu0 0
        %2387 = vmatprep.subr.bf16.mxu0 0
        %2388 = vmatpush1.bf16.msra.mxu0 0
        %2389 = vmatprep.subr.bf16.mxu0 0
        %2390 = vmatpush1.bf16.msra.mxu0 0
        %2391 = vmatprep.subr.bf16.mxu0 0
        %2392 = vmatpush1.bf16.msra.mxu0 0
        %2393 = vmatprep.subr.bf16.mxu0 0
        %2394 = vmatpush1.bf16.msra.mxu0 0
        %2395 = vmatprep.subr.bf16.mxu0 0
        %2396 = vmatpush1.bf16.msra.mxu0 0
        %2397 = vmatprep.subr.bf16.mxu0 0
        %2398 = vmatpush1.bf16.msra.mxu0 0
        %2399 = vmatprep.subr.bf16.mxu0 0
        %2400 = vmatpush1.bf16.msra.mxu0 0
        %2401 = vmatprep.subr.bf16.mxu0 0
        %2402 = vmatpush1.bf16.msra.mxu0 0
        %2403 = vmatprep.subr.bf16.mxu0 0
        %2404 = vmatpush1.bf16.msra.mxu0 0
        %2405 = vmatprep.subr.bf16.mxu0 0
        %2406 = vmatpush1.bf16.msra.mxu0 0
        %2407 = vmatprep.subr.bf16.mxu0 0
        %2408 = vmatpush1.bf16.msra.mxu0 0
        %2409 = vmatprep.subr.bf16.mxu0 0
        %2410 = vmatpush1.bf16.msra.mxu0 0
        %2411 = vmatprep.subr.bf16.mxu0 0
        %2412 = vmatpush1.bf16.msra.mxu0 0
        %2413 = vmatprep.mubr.bf16.mxu0 0
        %2414 = vmatmul.mubr.bf16.gmra.mrb[0].mxu0 %v2379
        %v2415 = vpop.f32.mrb[0].mxu0
        %v2416 = vadd.f32 0.0, %v2415
        %v2417 = vpop.f32.mrb[0].mxu0
        %v2418 = vpop.f32.mrb[0].mxu0
        %v2419 = vpop.f32.mrb[0].mxu0
        %2420 = vdwg.mxu0
        %v2421 = vld [vmem:[%s11] sm:$0xff]
        %v2422 = vld [vmem:[%s11 + $0x8] sm:$0xff]
        %v2423 = vld [vmem:[%s11 + $0x10] sm:$0xff]
        %v2424 = vld [vmem:[%s11 + $0x18] sm:$0xff]
        %v2425 = vld [vmem:[%s11 + $0x20] sm:$0xff]
        %v2426 = vld [vmem:[%s11 + $0x28] sm:$0xff]
        %v2427 = vld [vmem:[%s11 + $0x30] sm:$0xff]
        %v2428 = vld [vmem:[%s11 + $0x38] sm:$0xff]
        %2429 = vmatprep.subr.mxu0 0.0
        %2430 = vmatpush1.msra.mxu0 %v2425
        %2431 = vmatprep.subr.mxu0 0.0
        %2432 = vmatpush1.msra.mxu0 %v2426
        %2433 = vmatprep.subr.mxu0 0.0
        %2434 = vmatpush1.msra.mxu0 %v2427
        %2435 = vmatprep.subr.mxu0 0.0
        %2436 = vmatpush1.msra.mxu0 %v2428
        %2437 = vmatprep.subr.mxu0 0.0
        %2438 = vmatpush1.msra.mxu0 0.0
        %2439 = vmatprep.subr.mxu0 0.0
        %2440 = vmatpush1.msra.mxu0 0.0
        %2441 = vmatprep.subr.mxu0 0.0
        %2442 = vmatpush1.msra.mxu0 0.0
        %2443 = vmatprep.subr.mxu0 0.0
        %2444 = vmatpush1.msra.mxu0 0.0
        %2445 = vmatprep.subr.mxu0 0.0
        %2446 = vmatpush1.msra.mxu0 0.0
        %2447 = vmatprep.subr.mxu0 0.0
        %2448 = vmatpush1.msra.mxu0 0.0
        %2449 = vmatprep.subr.mxu0 0.0
        %2450 = vmatpush1.msra.mxu0 0.0
        %2451 = vmatprep.subr.mxu0 0.0
        %2452 = vmatpush1.msra.mxu0 0.0
        %2453 = vmatprep.subr.mxu0 0.0
        %2454 = vmatpush1.msra.mxu0 0.0
        %2455 = vmatprep.subr.mxu0 0.0
        %2456 = vmatpush1.msra.mxu0 0.0
        %2457 = vmatprep.subr.mxu0 0.0
        %2458 = vmatpush1.msra.mxu0 0.0
        %2459 = vmatprep.subr.mxu0 0.0
        %2460 = vmatpush1.msra.mxu0 0.0
        %2461 = vmatprep.subr.mxu0 0.0
        %2462 = vmatpush1.msra.mxu0 0.0
        %2463 = vmatprep.subr.mxu0 0.0
        %2464 = vmatpush1.msra.mxu0 0.0
        %2465 = vmatprep.subr.mxu0 0.0
        %2466 = vmatpush1.msra.mxu0 0.0
        %2467 = vmatprep.subr.mxu0 0.0
        %2468 = vmatpush1.msra.mxu0 0.0
        %2469 = vmatprep.subr.mxu0 0.0
        %2470 = vmatpush1.msra.mxu0 0.0
        %2471 = vmatprep.subr.mxu0 0.0
        %2472 = vmatpush1.msra.mxu0 0.0
        %2473 = vmatprep.subr.mxu0 0.0
        %2474 = vmatpush1.msra.mxu0 0.0
        %2475 = vmatprep.subr.mxu0 0.0
        %2476 = vmatpush1.msra.mxu0 0.0
        %2477 = vmatprep.subr.mxu0 0.0
        %2478 = vmatpush1.msra.mxu0 0.0
        %2479 = vmatprep.subr.mxu0 0.0
        %2480 = vmatpush1.msra.mxu0 0.0
        %2481 = vmatprep.subr.mxu0 0.0
        %2482 = vmatpush1.msra.mxu0 0.0
        %2483 = vmatprep.subr.mxu0 0.0
        %2484 = vmatpush1.msra.mxu0 0.0
        %2485 = vmatprep.subr.mxu0 0.0
        %2486 = vmatpush1.msra.mxu0 0.0
        %2487 = vmatprep.subr.mxu0 0.0
        %2488 = vmatpush1.msra.mxu0 0.0
        %2489 = vmatprep.subr.mxu0 0.0
        %2490 = vmatpush1.msra.mxu0 0.0
        %2491 = vmatprep.subr.mxu0 0.0
        %2492 = vmatpush1.msra.mxu0 0.0
        %2493 = vmatprep.mubr.f32.mxu0 0.0
        %2494 = vmatmul.mubr.f32.gmra.mrb[0].mxu0 %v715
        %v2495 = vpop.f32.mrb[0].mxu0
        %v2496 = vadd.f32 0.0, %v2495
        %v2497 = vpop.f32.mrb[0].mxu0
        %2498 = vdwg.mxu0
        %v2507 = vrot.slane %v2008, 7
        %v2508 = vsel %vm1265, %v2507, %v1940
        %v2509 = vrot.slane %v2076, 6
        %v2510 = vsel %vm1267, %v2509, %v2508
        %v2511 = vrot.slane %v2144, 5
        %v2512 = vsel %vm1269, %v2511, %v2510
        %v2513 = vrot.slane %v2212, 4
        %v2514 = vsel %vm1271, %v2513, %v2512
        %v2515 = vrot.slane %v2280, 3
        %v2516 = vsel %vm1273, %v2515, %v2514
        %v2517 = vrot.slane %v2348, 2
        %v2518 = vsel %vm1275, %v2517, %v2516
        %v2519 = vrot.slane %v2416, 1
        %v2520 = vsel %vm1277, %v2519, %v2518
        %v2521 = vsel %vm713, %v2520, 0
        %2523 = vmatprep.subr.mxu0 0.0
        %2524 = vmatpush1.msra.mxu0 %v2421
        %2525 = vmatprep.subr.mxu0 0.0
        %2526 = vmatpush1.msra.mxu0 %v2422
        %2527 = vmatprep.subr.mxu0 0.0
        %2528 = vmatpush1.msra.mxu0 %v2423
        %2529 = vmatprep.subr.mxu0 0.0
        %2530 = vmatpush1.msra.mxu0 %v2424
        %2531 = vmatprep.subr.mxu0 0.0
        %2532 = vmatpush1.msra.mxu0 0.0
        %2533 = vmatprep.subr.mxu0 0.0
        %2534 = vmatpush1.msra.mxu0 0.0
        %2535 = vmatprep.subr.mxu0 0.0
        %2536 = vmatpush1.msra.mxu0 0.0
        %2537 = vmatprep.subr.mxu0 0.0
        %2538 = vmatpush1.msra.mxu0 0.0
        %2539 = vmatprep.subr.mxu0 0.0
        %2540 = vmatpush1.msra.mxu0 0.0
        %2541 = vmatprep.subr.mxu0 0.0
        %2542 = vmatpush1.msra.mxu0 0.0
        %2543 = vmatprep.subr.mxu0 0.0
        %2544 = vmatpush1.msra.mxu0 0.0
        %2545 = vmatprep.subr.mxu0 0.0
        %2546 = vmatpush1.msra.mxu0 0.0
        %2547 = vmatprep.subr.mxu0 0.0
        %2548 = vmatpush1.msra.mxu0 0.0
        %2549 = vmatprep.subr.mxu0 0.0
        %2550 = vmatpush1.msra.mxu0 0.0
        %2551 = vmatprep.subr.mxu0 0.0
        %2552 = vmatpush1.msra.mxu0 0.0
        %2553 = vmatprep.subr.mxu0 0.0
        %2554 = vmatpush1.msra.mxu0 0.0
        %2555 = vmatprep.subr.mxu0 0.0
        %2556 = vmatpush1.msra.mxu0 0.0
        %2557 = vmatprep.subr.mxu0 0.0
        %2558 = vmatpush1.msra.mxu0 0.0
        %2559 = vmatprep.subr.mxu0 0.0
        %2560 = vmatpush1.msra.mxu0 0.0
        %2561 = vmatprep.subr.mxu0 0.0
        %2562 = vmatpush1.msra.mxu0 0.0
        %2563 = vmatprep.subr.mxu0 0.0
        %2564 = vmatpush1.msra.mxu0 0.0
        %2565 = vmatprep.subr.mxu0 0.0
        %2566 = vmatpush1.msra.mxu0 0.0
        %2567 = vmatprep.subr.mxu0 0.0
        %2568 = vmatpush1.msra.mxu0 0.0
        %2569 = vmatprep.subr.mxu0 0.0
        %2570 = vmatpush1.msra.mxu0 0.0
        %2571 = vmatprep.subr.mxu0 0.0
        %2572 = vmatpush1.msra.mxu0 0.0
        %2573 = vmatprep.subr.mxu0 0.0
        %2574 = vmatpush1.msra.mxu0 0.0
        %2575 = vmatprep.subr.mxu0 0.0
        %2576 = vmatpush1.msra.mxu0 0.0
        %2577 = vmatprep.subr.mxu0 0.0
        %2578 = vmatpush1.msra.mxu0 0.0
        %2579 = vmatprep.subr.mxu0 0.0
        %2580 = vmatpush1.msra.mxu0 0.0
        %2581 = vmatprep.subr.mxu0 0.0
        %2582 = vmatpush1.msra.mxu0 0.0
        %2583 = vmatprep.subr.mxu0 0.0
        %2584 = vmatpush1.msra.mxu0 0.0
        %2585 = vmatprep.subr.mxu0 0.0
        %2586 = vmatpush1.msra.mxu0 0.0
        %2587 = vmatprep.mubr.f32.mxu0 0.0
        %2588 = vmatmul.mubr.f32.gmra.mrb[0].mxu0 %v2521
        %v2589 = vpop.f32.mrb[0].mxu0
        %v2590 = vadd.f32 %v2496, %v2589
        %v2591 = vpop.f32.mrb[0].mxu0
        %2592 = vdwg.mxu0
        %v2593 = vld [vmem:[#allocation14] sm:$0x1]
        %v2595 = vlaneseq
        %v2596 = vshrl.u32 %v2595, 7
        %v2597 = vsub.s32 0, %v2596
        %v2598 = vrot.slane %v2593, %v2597
        %v2600 = vadd.f32 %v2590, %v2598
        %v2601 = vtanh.pop %v2600
        %2602 = vst.msk [vmem:[%s671] sm:$0xff] %vm713, %v2601
        %s2603 = sand.u32 %s349, 1
        %s2604 = scalar_lea.sflag [#allocation5], %s2603
        %s2605 = sand.u32 %s349, 1
        %s2606 = smul.addr %s2605, 8
        %s2607 = scalar_lea.vmem [#allocation15], %s2606
        %s2608 = sand.u32 %s43, 1
        %s2609 = scalar_lea.sflag [#allocation17], %s2608
        %s2610 = sand.u32 %s375, 1
        %s2611 = smul.addr %s2610, 8
        %s2612 = scalar_lea.vmem [#allocation16], %s2611
        %s2613 = sand.u32 %s43, 1
        %s2614 = scalar_lea.sflag [#allocation17], %s2613
        %s2615 = sand.u32 %s401, 1
        %s2616 = smul.addr %s2615, 8
        %s2617 = scalar_lea.vmem [#allocation18], %s2616
        // Predicated region
        $region101: #{tpu_custom_call.1} parent=71 // pred_check
          %p2618 = pneg %p359
        $region102: #{tpu_custom_call.1} parent=71 // pred_check_branch
          %2620 = sbr.rel (%p2618) target = $region104
        $region103: #{tpu_custom_call.1} parent=71 // pred_region
          %s2622 = ssub.s32 128, 128
          %2623 = vsyncadd %s2604, %s2622
          %s2624 = smul.addr %s43, 128
          %s2625 = scalar_lea.hbm %s13, %s2624
          %s2627 = sshll.u32 %s2607, 4
          %s2628 = int_to_ptr.vmem [resolvable:$true] %s2627
          %2630 = dma.vmem_to_hbm [thread:$0]  %s2628, 128, %s2625, %s2604
        $region104: #{tpu_custom_call.1} parent=71 // pred_fallthru
          _
        // Predicated region
        $region105: #{tpu_custom_call.1} parent=71 // pred_check
          %p2631 = pneg %p385
        $region106: #{tpu_custom_call.1} parent=71 // pred_check_branch
          %2633 = sbr.rel (%p2631) target = $region108
        $region107: #{tpu_custom_call.1} parent=71 // pred_region
          %s2635 = ssub.s32 128, 128
          %2636 = vsyncadd %s2609, %s2635
          %s2637 = smul.addr %s43, 128
          %s2638 = scalar_lea.hbm %s14, %s2637
          %s2640 = sshll.u32 %s2612, 4
          %s2641 = int_to_ptr.vmem [resolvable:$true] %s2640
          %2643 = dma.vmem_to_hbm [thread:$0]  %s2641, 128, %s2638, %s2609
        $region108: #{tpu_custom_call.1} parent=71 // pred_fallthru
          _
        // Predicated region
        $region109: #{tpu_custom_call.1} parent=71 // pred_check
          %p2644 = pneg %p411
        $region110: #{tpu_custom_call.1} parent=71 // pred_check_branch
          %2646 = sbr.rel (%p2644) target = $region112
        $region111: #{tpu_custom_call.1} parent=71 // pred_region
          %s2648 = ssub.s32 128, 128
          %2649 = vsyncadd %s2614, %s2648
          %s2650 = smul.addr %s43, 128
          %s2651 = scalar_lea.hbm %s15, %s2650
          %s2653 = sshll.u32 %s2617, 4
          %s2654 = int_to_ptr.vmem [resolvable:$true] %s2653
          %2656 = dma.vmem_to_hbm [thread:$0]  %s2654, 128, %s2651, %s2614
        $region112: #{tpu_custom_call.1} parent=71 // pred_fallthru
          _
      $region72: #{tpu_custom_call.1} parent=5 // pred_fallthru
        _
      %p2657 = scmp.le.s32.totalorder 2, %s38
      // Predicated region
      $region113: #{tpu_custom_call.1} parent=5 // pred_check
        %p2658 = pneg %p2657
      $region114: #{tpu_custom_call.1} parent=5 // pred_check_branch
        %2660 = sbr.rel (%p2658) target = $region116
      $region115: #{tpu_custom_call.1} parent=5 // pred_region
        %s2661 = ssub.s32 %s38, 2
        // Predicated region
        $region117: #{tpu_custom_call.1} parent=115 // pred_check
          %p2662 = pneg %p365
        $region118: #{tpu_custom_call.1} parent=115 // pred_check_branch
          %2664 = sbr.rel (%p2662) target = $region120
        $region119: #{tpu_custom_call.1} parent=115 // pred_region
          %s2665 = sand.u32 %s350, 1
          %s2666 = scalar_lea.sflag [#allocation5], %s2665
          %s2667 = sand.u32 %s350, 1
          %s2668 = smul.addr %s2667, 8
          %s2669 = scalar_lea.vmem [#allocation15], %s2668
          %2670 = dma.done %s2666, 128
        $region120: #{tpu_custom_call.1} parent=115 // pred_fallthru
          _
        // Predicated region
        $region121: #{tpu_custom_call.1} parent=115 // pred_check
          %p2671 = pneg %p391
        $region122: #{tpu_custom_call.1} parent=115 // pred_check_branch
          %2673 = sbr.rel (%p2671) target = $region124
        $region123: #{tpu_custom_call.1} parent=115 // pred_region
          %s2674 = sand.u32 %s44, 1
          %s2675 = scalar_lea.sflag [#allocation17], %s2674
          %s2676 = sand.u32 %s376, 1
          %s2677 = smul.addr %s2676, 8
          %s2678 = scalar_lea.vmem [#allocation16], %s2677
          %2679 = dma.done %s2675, 128
        $region124: #{tpu_custom_call.1} parent=115 // pred_fallthru
          _
        // Predicated region
        $region125: #{tpu_custom_call.1} parent=115 // pred_check
          %p2680 = pneg %p417
        $region126: #{tpu_custom_call.1} parent=115 // pred_check_branch
          %2682 = sbr.rel (%p2680) target = $region128
        $region127: #{tpu_custom_call.1} parent=115 // pred_region
          %s2683 = sand.u32 %s44, 1
          %s2684 = scalar_lea.sflag [#allocation17], %s2683
          %s2685 = sand.u32 %s402, 1
          %s2686 = smul.addr %s2685, 8
          %s2687 = scalar_lea.vmem [#allocation18], %s2686
          %2688 = dma.done %s2684, 128
        $region128: #{tpu_custom_call.1} parent=115 // pred_fallthru
          _
      $region116: #{tpu_custom_call.1} parent=5 // pred_fallthru
        _
    $region6: #{tpu_custom_call.1} parent=1 // loop_footer
      %s42 = sadd.s32 1, %s38
    $region7: #{tpu_custom_call.1} parent=1 // loop_footer_branch
      %37 = sbr.rel target = $region3
    $region8: #{tpu_custom_call.1} parent=1 // loop_exit
      _
    %2689 = vsyncpa [#allocation4], 1
    %s2690 = scalar_lea.sflag [#allocation4], 1
    %2691 = vsyncpa %s2690, 1
    %2692 = vsyncpa [#allocation7], 1
    %s2693 = scalar_lea.sflag [#allocation7], 1
    %2694 = vsyncpa %s2693, 1
    %2695 = vsyncpa [#allocation10], 1
    %2696 = vsyncpa [#allocation13], 1
    %2697 = vsyncpa [#allocation5], 1
    %s2698 = scalar_lea.sflag [#allocation5], 1
    %2699 = vsyncpa %s2698, 1
    %2700 = vsyncpa [#allocation17], 1
    %s2701 = scalar_lea.sflag [#allocation17], 1
    %2702 = vsyncpa %s2701, 1

</llo_original>
